<compile_context>
chip_gen: v7x
topology: tpu7x:2x2x1
jax: 0.10.0
libtpu: 0.0.40
codegen_flags: <defaults>
</compile_context>

<pallas_src>
import functools

import jax
import jax.numpy as jnp
import numpy as np
from jax.experimental import pallas as pl
from jax.experimental.pallas import tpu as pltpu

_LANES = 1024     # lane-dense slab width (multiple of 128)
_SUBLANE = 8      # sublane granularity


def _round_up(a: int, b: int) -> int:
    return -(-a // b) * b


def _embed_kernel(x_ref, o_ref, *, freqs, include_input, use_double_angle):
    # x_ref: (tile_r, LANES) flat-element tile.
    # o_ref: (num_pieces, tile_r, LANES) — one lane-dense slab per piece.
    x = x_ref[...].astype(jnp.float32)

    p = 0
    if include_input:
        o_ref[p] = x.astype(o_ref.dtype)
        p += 1

    if not freqs:
        return

    if use_double_angle:
        # freqs[k+1] == 2 * freqs[k] exactly: one sin/cos pair on the EUP,
        # higher octaves via VPU-only double-angle recurrence.
        xf = x * freqs[0]
        s = jnp.sin(xf)
        c = jnp.cos(xf)
        o_ref[p] = s.astype(o_ref.dtype)
        o_ref[p + 1] = c.astype(o_ref.dtype)
        p += 2
        for _ in freqs[1:]:
            s, c = 2.0 * s * c, c * c - s * s
            o_ref[p] = s.astype(o_ref.dtype)
            o_ref[p + 1] = c.astype(o_ref.dtype)
            p += 2
    else:
        for f in freqs:  # static Python loop — freqs are compile-time constants
            xf = x * f
            o_ref[p] = jnp.sin(xf).astype(o_ref.dtype)
            o_ref[p + 1] = jnp.cos(xf).astype(o_ref.dtype)
            p += 2


class PallasEmbedder:
    """Pallas-TPU equivalent of the PyTorch `Embedder` module."""

    def __init__(self, **kwargs):
        self.kwargs = kwargs
        d = kwargs["input_dims"]
        max_freq = kwargs["max_freq_log2"]
        n_freqs = kwargs["num_freqs"]
        if kwargs["log_sampling"]:
            freq_bands = 2.0 ** np.linspace(0.0, max_freq, num=n_freqs)
        else:
            freq_bands = np.linspace(2.0 ** 0.0, 2.0 ** max_freq, num=n_freqs)
        self.freqs = tuple(float(f) for f in freq_bands)
        self.include_input = bool(kwargs["include_input"])
        self.input_dims = d
        self.num_pieces = int(self.include_input) + 2 * n_freqs
        self.out_dim = d * self.num_pieces

        # TODO(synk): the kernel hardcodes the (sin, cos) periodic-fn pair of
        # the reference NeRF config; arbitrary `periodic_fns` are not supported.

        # Double-angle recurrence is valid only when every band is exactly
        # twice the previous one (the standard NeRF log_sampling config).
        f = np.asarray(self.freqs, dtype=np.float64)
        self.use_double_angle = bool(
            kwargs["log_sampling"]
            and len(f) >= 2
            and np.array_equal(f[1:], 2.0 * f[:-1])
        )

    def __call__(self, x, *, lanes=_LANES, vmem_budget_bytes=12 * 1024 * 1024):
        n, d = x.shape
        assert d == self.input_dims
        if self.num_pieces == 0:
            return jnp.zeros((n, 0), dtype=x.dtype)

        total = n * d

        # Rows-per-tile from a conservative VMEM budget: double-buffered
        # (input + num_pieces output) f32 slabs of width `lanes`.
        bytes_per_row = (1 + self.num_pieces) * lanes * 4 * 2
        tile_r = max(_SUBLANE,
                     (vmem_budget_bytes // bytes_per_row) // _SUBLANE * _SUBLANE)

        rows = -(-total // lanes)                       # ceil(total / lanes)
        tile_r = min(tile_r, _round_up(rows, _SUBLANE))  # don't exceed the data
        rows_padded = _round_up(rows, tile_r)
        padded = rows_padded * lanes

        # Flatten N*D and zero-pad the tail (computed then cropped — harmless).
        x_flat = jnp.pad(x.reshape(-1), (0, padded - total))
        x_flat = x_flat.reshape(rows_padded, lanes)

        kernel = functools.partial(
            _embed_kernel,
            freqs=self.freqs,
            include_input=self.include_input,
            use_double_angle=self.use_double_angle,
        )

        slab = pl.pallas_call(
            kernel,
            out_shape=jax.ShapeDtypeStruct(
                (self.num_pieces, rows_padded, lanes), x.dtype),
            grid_spec=pltpu.PrefetchScalarGridSpec(
                num_scalar_prefetch=0,
                grid=(rows_padded // tile_r,),
                in_specs=[pl.BlockSpec((tile_r, lanes), lambda i: (i, 0))],
                out_specs=pl.BlockSpec(
                    (self.num_pieces, tile_r, lanes), lambda i: (0, i, 0)),
            ),
            compiler_params=pltpu.CompilerParams(
                dimension_semantics=("parallel",)),
        )(x_flat)

        # Layout plumbing back to PyTorch order:
        # (P, rows, lanes) -> (P, total) -> (P, N, D) -> (N, P, D) -> (N, P*D)
        out = slab.reshape(self.num_pieces, padded)[:, :total]
        out = out.reshape(self.num_pieces, n, d)
        out = jnp.transpose(out, (1, 0, 2)).reshape(n, self.out_dim)
        return out


def _reference(x, freqs, include_input):
    x32 = x.astype(jnp.float32)
    pieces = []
    if include_input:
        pieces.append(x32)
    for f in freqs:
        pieces.append(jnp.sin(x32 * f))
        pieces.append(jnp.cos(x32 * f))
    return jnp.concatenate(pieces, axis=1).astype(x.dtype)


if __name__ == "__main__":
    key = jax.random.PRNGKey(0)
    N, D = 16, 3  # small NeRF-style points: 16 points, 3 coords
    x = jax.random.normal(key, (N, D), dtype=jnp.float32)

    # Config 1: standard NeRF log-sampled bands (exercises the double-angle
    # recurrence path).
    emb_log = PallasEmbedder(
        include_input=True,
        input_dims=D,
        max_freq_log2=3,
        num_freqs=4,
        log_sampling=True,
        periodic_fns=[jnp.sin, jnp.cos],  # API parity with PyTorch
    )
    out1 = jax.block_until_ready(emb_log(x))
    ref1 = _reference(x, emb_log.freqs, emb_log.include_input)
    assert out1.shape == (N, emb_log.out_dim)
    assert out1.dtype == x.dtype
    np.testing.assert_allclose(np.asarray(out1), np.asarray(ref1),
                               rtol=2e-5, atol=2e-5)

    # Config 2: linearly-sampled bands (exercises the direct sin/cos path).
    emb_lin = PallasEmbedder(
        include_input=True,
        input_dims=D,
        max_freq_log2=2,
        num_freqs=3,
        log_sampling=False,
        periodic_fns=[jnp.sin, jnp.cos],
    )
    out2 = jax.block_until_ready(emb_lin(x))
    ref2 = _reference(x, emb_lin.freqs, emb_lin.include_input)
    assert out2.shape == (N, emb_lin.out_dim)
    np.testing.assert_allclose(np.asarray(out2), np.asarray(ref2),
                               rtol=1e-5, atol=1e-5)

    print("KERNEL_OK")
</pallas_src>

<mosaic_0001>
module attributes {stable_mosaic.version = 11 : i64} {
  func.func @_embed_kernel(%arg0: i32, %arg1: memref<8x1024xf32, #tpu.memory_space<vmem>>, %arg2: memref<9x8x1024xf32, #tpu.memory_space<vmem>>) attributes {dimension_semantics = [#tpu.dimension_semantics<parallel>], iteration_bounds = array<i64: 1>, scalar_prefetch = 0 : i64, scratch_operands = 0 : i64, tpu.core_type = #tpu.core_type<tc>, window_params = [{transform_indices = @transform_0, window_bounds = array<i64: 8, 1024>}, {transform_indices = @transform_1, window_bounds = array<i64: 9, 8, 1024>}]} {
    %c0 = arith.constant 0 : index
    %c0_0 = arith.constant 0 : index
    %0 = vector.load %arg1[%c0, %c0_0] : memref<8x1024xf32, #tpu.memory_space<vmem>>, vector<8x1024xf32>
    %c0_1 = arith.constant 0 : index
    %c0_2 = arith.constant 0 : index
    %c0_3 = arith.constant 0 : index
    %1 = vector.load %arg2[%c0_1, %c0_2, %c0_3] : memref<9x8x1024xf32, #tpu.memory_space<vmem>>, vector<1x8x1024xf32>
    %2 = vector.shape_cast %1 : vector<1x8x1024xf32> to vector<8x1024xf32>
    %3 = vector.shape_cast %0 : vector<8x1024xf32> to vector<1x8x1024xf32>
    tpu.vector_store %arg2[%c0_1, %c0_2, %c0_3], %3 {strides = array<i32>} : memref<9x8x1024xf32, #tpu.memory_space<vmem>>, vector<1x8x1024xf32>,
    %cst = arith.constant 1.000000e+00 : f32
    %4 = vector.broadcast %cst : f32 to vector<8x1024xf32>
    %5 = arith.mulf %0, %4 : vector<8x1024xf32>
    %6 = math.sin %5 : vector<8x1024xf32>
    %7 = math.cos %5 : vector<8x1024xf32>
    %c1 = arith.constant 1 : index
    %c0_4 = arith.constant 0 : index
    %c0_5 = arith.constant 0 : index
    %8 = vector.load %arg2[%c1, %c0_4, %c0_5] : memref<9x8x1024xf32, #tpu.memory_space<vmem>>, vector<1x8x1024xf32>
    %9 = vector.shape_cast %8 : vector<1x8x1024xf32> to vector<8x1024xf32>
    %10 = vector.shape_cast %6 : vector<8x1024xf32> to vector<1x8x1024xf32>
    tpu.vector_store %arg2[%c1, %c0_4, %c0_5], %10 {strides = array<i32>} : memref<9x8x1024xf32, #tpu.memory_space<vmem>>, vector<1x8x1024xf32>,
    %c2 = arith.constant 2 : index
    %c0_6 = arith.constant 0 : index
    %c0_7 = arith.constant 0 : index
    %11 = vector.load %arg2[%c2, %c0_6, %c0_7] : memref<9x8x1024xf32, #tpu.memory_space<vmem>>, vector<1x8x1024xf32>
    %12 = vector.shape_cast %11 : vector<1x8x1024xf32> to vector<8x1024xf32>
    %13 = vector.shape_cast %7 : vector<8x1024xf32> to vector<1x8x1024xf32>
    tpu.vector_store %arg2[%c2, %c0_6, %c0_7], %13 {strides = array<i32>} : memref<9x8x1024xf32, #tpu.memory_space<vmem>>, vector<1x8x1024xf32>,
    %cst_8 = arith.constant 2.000000e+00 : f32
    %14 = vector.broadcast %cst_8 : f32 to vector<8x1024xf32>
    %15 = arith.mulf %14, %6 : vector<8x1024xf32>
    %16 = arith.mulf %15, %7 : vector<8x1024xf32>
    %17 = arith.mulf %7, %7 : vector<8x1024xf32>
    %18 = arith.mulf %6, %6 : vector<8x1024xf32>
    %19 = arith.subf %17, %18 : vector<8x1024xf32>
    %c3 = arith.constant 3 : index
    %c0_9 = arith.constant 0 : index
    %c0_10 = arith.constant 0 : index
    %20 = vector.load %arg2[%c3, %c0_9, %c0_10] : memref<9x8x1024xf32, #tpu.memory_space<vmem>>, vector<1x8x1024xf32>
    %21 = vector.shape_cast %20 : vector<1x8x1024xf32> to vector<8x1024xf32>
    %22 = vector.shape_cast %16 : vector<8x1024xf32> to vector<1x8x1024xf32>
    tpu.vector_store %arg2[%c3, %c0_9, %c0_10], %22 {strides = array<i32>} : memref<9x8x1024xf32, #tpu.memory_space<vmem>>, vector<1x8x1024xf32>,
    %c4 = arith.constant 4 : index
    %c0_11 = arith.constant 0 : index
    %c0_12 = arith.constant 0 : index
    %23 = vector.load %arg2[%c4, %c0_11, %c0_12] : memref<9x8x1024xf32, #tpu.memory_space<vmem>>, vector<1x8x1024xf32>
    %24 = vector.shape_cast %23 : vector<1x8x1024xf32> to vector<8x1024xf32>
    %25 = vector.shape_cast %19 : vector<8x1024xf32> to vector<1x8x1024xf32>
    tpu.vector_store %arg2[%c4, %c0_11, %c0_12], %25 {strides = array<i32>} : memref<9x8x1024xf32, #tpu.memory_space<vmem>>, vector<1x8x1024xf32>,
    %cst_13 = arith.constant 2.000000e+00 : f32
    %26 = vector.broadcast %cst_13 : f32 to vector<8x1024xf32>
    %27 = arith.mulf %26, %16 : vector<8x1024xf32>
    %28 = arith.mulf %27, %19 : vector<8x1024xf32>
    %29 = arith.mulf %19, %19 : vector<8x1024xf32>
    %30 = arith.mulf %16, %16 : vector<8x1024xf32>
    %31 = arith.subf %29, %30 : vector<8x1024xf32>
    %c5 = arith.constant 5 : index
    %c0_14 = arith.constant 0 : index
    %c0_15 = arith.constant 0 : index
    %32 = vector.load %arg2[%c5, %c0_14, %c0_15] : memref<9x8x1024xf32, #tpu.memory_space<vmem>>, vector<1x8x1024xf32>
    %33 = vector.shape_cast %32 : vector<1x8x1024xf32> to vector<8x1024xf32>
    %34 = vector.shape_cast %28 : vector<8x1024xf32> to vector<1x8x1024xf32>
    tpu.vector_store %arg2[%c5, %c0_14, %c0_15], %34 {strides = array<i32>} : memref<9x8x1024xf32, #tpu.memory_space<vmem>>, vector<1x8x1024xf32>,
    %c6 = arith.constant 6 : index
    %c0_16 = arith.constant 0 : index
    %c0_17 = arith.constant 0 : index
    %35 = vector.load %arg2[%c6, %c0_16, %c0_17] : memref<9x8x1024xf32, #tpu.memory_space<vmem>>, vector<1x8x1024xf32>
    %36 = vector.shape_cast %35 : vector<1x8x1024xf32> to vector<8x1024xf32>
    %37 = vector.shape_cast %31 : vector<8x1024xf32> to vector<1x8x1024xf32>
    tpu.vector_store %arg2[%c6, %c0_16, %c0_17], %37 {strides = array<i32>} : memref<9x8x1024xf32, #tpu.memory_space<vmem>>, vector<1x8x1024xf32>,
    %cst_18 = arith.constant 2.000000e+00 : f32
    %38 = vector.broadcast %cst_18 : f32 to vector<8x1024xf32>
    %39 = arith.mulf %38, %28 : vector<8x1024xf32>
    %40 = arith.mulf %39, %31 : vector<8x1024xf32>
    %41 = arith.mulf %31, %31 : vector<8x1024xf32>
    %42 = arith.mulf %28, %28 : vector<8x1024xf32>
    %43 = arith.subf %41, %42 : vector<8x1024xf32>
    %c7 = arith.constant 7 : index
    %c0_19 = arith.constant 0 : index
    %c0_20 = arith.constant 0 : index
    %44 = vector.load %arg2[%c7, %c0_19, %c0_20] : memref<9x8x1024xf32, #tpu.memory_space<vmem>>, vector<1x8x1024xf32>
    %45 = vector.shape_cast %44 : vector<1x8x1024xf32> to vector<8x1024xf32>
    %46 = vector.shape_cast %40 : vector<8x1024xf32> to vector<1x8x1024xf32>
    tpu.vector_store %arg2[%c7, %c0_19, %c0_20], %46 {strides = array<i32>} : memref<9x8x1024xf32, #tpu.memory_space<vmem>>, vector<1x8x1024xf32>,
    %c8 = arith.constant 8 : index
    %c0_21 = arith.constant 0 : index
    %c0_22 = arith.constant 0 : index
    %47 = vector.load %arg2[%c8, %c0_21, %c0_22] : memref<9x8x1024xf32, #tpu.memory_space<vmem>>, vector<1x8x1024xf32>
    %48 = vector.shape_cast %47 : vector<1x8x1024xf32> to vector<8x1024xf32>
    %49 = vector.shape_cast %43 : vector<8x1024xf32> to vector<1x8x1024xf32>
    tpu.vector_store %arg2[%c8, %c0_21, %c0_22], %49 {strides = array<i32>} : memref<9x8x1024xf32, #tpu.memory_space<vmem>>, vector<1x8x1024xf32>,
    return
  }
  func.func @transform_0(%arg0: i32) -> (i32, i32) {
    %c0_i32 = arith.constant 0 : i32
    %c0_i32_0 = arith.constant 0 : i32
    return %arg0, %c0_i32 : i32, i32
  }
  func.func @transform_1(%arg0: i32) -> (i32, i32, i32) {
    %c0_i32 = arith.constant 0 : i32
    %c0_i32_0 = arith.constant 0 : i32
    %c0_i32_1 = arith.constant 0 : i32
    return %c0_i32, %arg0, %c0_i32_0 : i32, i32, i32
  }
}

</mosaic_0001>

<llo_original>
// kernel: tpu_custom_call.1
$region0: #{tpu_custom_call.1}
  #allocation0 [shape = 'u32[]', space=smem, size = 0x4, offset = 0x4, fixed_abs, tag = 'smem constant byte address 0x4 - core index']
  #allocation1 [shape = 'u32[144,128]{1,0:T(1,128)}', space=vmem, size = 0x12000, scoped, tag = 'internal scratch']
  %s0 = inlined_call_operand.hbm [shape: f32[8,1024], index: 0, kind: input, shape index: {}]
  %s1 = inlined_call_operand.hbm [shape: f32[9,8,1024], index: 1, kind: output, shape index: {}]
  %s2 = sld [smem:[#allocation0]]
  $region18: #{tpu_custom_call.1} parent=0
    _
  %s4 = ssub.s32 1, %s2
  %s5 = scalar_select 0, %s4, %s2
  $region1: #{tpu_custom_call.1} parent=0
    #allocation2 [shape = 'u8[32768]{0}', space=vmem, size = 0x8000, scoped, tag = 'input window, operand 0, single buffered']
    #allocation3 [shape = 's32[1]{0}', space=sflag, size = 0x4, scoped, tag = 'scoped memory for tpu_custom_call.1']
    #allocation4 [shape = 's32[1]{0}', space=sflag, size = 0x4, scoped, tag = 'scoped memory for tpu_custom_call.1']
    #allocation5 [shape = 'u8[294912]{0}', space=vmem, size = 0x48000, scoped, tag = 'output window, operand 0, single buffered']
    %6 = vsyncpa [#allocation3], 0
    %7 = vsyncpa [#allocation4], 0
    // Predicated region
    $region2: #{tpu_custom_call.1} parent=1 // pred_check
      _
    $region3: #{tpu_custom_call.1} parent=1 // pred_check_branch
      %9 = sbr.rel (0) target = $region5
    $region4: #{tpu_custom_call.1} parent=1 // pred_region
      %s11 = ssub.s32 1024, 1024
      %12 = vsyncadd [#allocation3], %s11
      %s14 = sshll.u32 [#allocation2], 4
      %s15 = int_to_ptr.vmem [resolvable:$true] %s14
      %17 = dma.hbm_to_vmem [thread:$0]  %s0, 1024, %s15, [#allocation3]
    $region5: #{tpu_custom_call.1} parent=1 // pred_fallthru
      _
    // Predicated region
    $region6: #{tpu_custom_call.1} parent=1 // pred_check
      _
    $region7: #{tpu_custom_call.1} parent=1 // pred_check_branch
      %19 = sbr.rel (0) target = $region9
    $region8: #{tpu_custom_call.1} parent=1 // pred_region
      %20 = dma.done [#allocation3], 1024
    $region9: #{tpu_custom_call.1} parent=1 // pred_fallthru
      _
    %v21 = vld [vmem:[#allocation2] sm:$0xff]
    %v22 = vld [vmem:[#allocation2 + $0x8] sm:$0xff]
    %v23 = vld [vmem:[#allocation2 + $0x10] sm:$0xff]
    %v24 = vld [vmem:[#allocation2 + $0x18] sm:$0xff]
    %v25 = vld [vmem:[#allocation2 + $0x20] sm:$0xff]
    %v26 = vld [vmem:[#allocation2 + $0x28] sm:$0xff]
    %v27 = vld [vmem:[#allocation2 + $0x30] sm:$0xff]
    %v28 = vld [vmem:[#allocation2 + $0x38] sm:$0xff]
    %29 = vst [vmem:[#allocation5] sm:$0xff] %v21
    %30 = vst [vmem:[#allocation5 + $0x8] sm:$0xff] %v22
    %31 = vst [vmem:[#allocation5 + $0x10] sm:$0xff] %v23
    %32 = vst [vmem:[#allocation5 + $0x18] sm:$0xff] %v24
    %33 = vst [vmem:[#allocation5 + $0x20] sm:$0xff] %v25
    %34 = vst [vmem:[#allocation5 + $0x28] sm:$0xff] %v26
    %35 = vst [vmem:[#allocation5 + $0x30] sm:$0xff] %v27
    %36 = vst [vmem:[#allocation5 + $0x38] sm:$0xff] %v28
    %v37 = vand.u32 2147483647, %v21
    %vm38 = vcmp.le.f32.partialorder %v37, 0.7853982
    %vm39 = vcmp.lt.s32.totalorder %v21, 0
    %v40 = vand.u32 %v21, 2139095040
    %v41 = vshrl.u32 %v40, 23
    %v42 = vsub.s32 %v41, 127
    %v43 = vand.u32 2147483647, %v21
    %v44 = vand.u32 %v43, 8388607
    %v45 = vor.u32 %v44, 8388608
    %v46 = vsub.s32 0, %v45
    %v47 = vadd.s32 %v42, 1
    %vm48 = vcmp.gt.s32.totalorder %v47, 0
    %v49 = vsel %vm48, %v47, 0
    %v50 = vshrl.u32 %v49, 5
    %v51 = vand.u32 %v49, 31
    %v52 = vsub.s32 32, %v51
    %v53 = vshrl.u32 683565275, %v52
    %v54 = vshll.u32 683565275, %v51
    %v55 = vshrl.u32 2475754826, %v52
    %v56 = vor.u32 %v54, %v55
    %v57 = vshll.u32 2475754826, %v51
    %v58 = vshrl.u32 2131351028, %v52
    %v59 = vor.u32 %v57, %v58
    %v60 = vshll.u32 2131351028, %v51
    %v61 = vshrl.u32 2102212464, %v52
    %v62 = vor.u32 %v60, %v61
    %v63 = vshll.u32 2102212464, %v51
    %v64 = vshrl.u32 920167782, %v52
    %v65 = vor.u32 %v63, %v64
    %v66 = vshll.u32 920167782, %v51
    %v67 = vshrl.u32 1326507024, %v52
    %v68 = vor.u32 %v66, %v67
    %vm69 = vcmp.lt.s32.totalorder %v50, 1
    %vm70 = vcmp.lt.s32.totalorder %v50, 2
    %vm71 = vcmp.lt.s32.totalorder %v50, 3
    %vm72 = vcmp.lt.s32.totalorder %v50, 4
    %v73 = vsel %vm69, %v53, %v56
    %v74 = vsel %vm72, %v62, 2102212464
    %v75 = vsel %vm71, %v59, %v74
    %v76 = vsel %vm70, %v73, %v75
    %v77 = vsel %vm69, %v56, %v59
    %v78 = vsel %vm72, %v65, 920167782
    %v79 = vsel %vm71, %v62, %v78
    %v80 = vsel %vm70, %v77, %v79
    %v81 = vsel %vm69, %v59, %v62
    %v82 = vsel %vm72, %v68, 1326507024
    %v83 = vsel %vm71, %v65, %v82
    %v84 = vsel %vm70, %v81, %v83
    %v85 = vshll.u32 %v45, 8
    %v86 = vmul.u32.u64.compose %v85, %v84
    %v87 = vextract.low.u32 %v86
    %v88 = vextract.high.u32 %v86
    %v89 = vmul.u32.u64.compose %v85, %v80
    %v90 = vextract.low.u32 %v89
    %v91 = vextract.high.u32 %v89
    %v92 = vmul.u32 %v85, %v76
    %v93 = vadd.s32 %v88, %v90
    %vm94 = vc.u32 %v88, %v90
    %v95 = vadd.s32 %v91, 1
    %v96 = vsel %vm94, %v95, %v91
    %v97 = vadd.s32 %v92, %v96
    %v98 = vadd.s32 %v97, 536870912
    %v99 = vshrl.u32 %v98, 30
    %v100 = vshll.u32 %v99, 30
    %v101 = vsub.s32 %v97, %v100
    %vm102 = vcmp.lt.s32.totalorder %v101, 0
    %v103 = vsub.s32 0, %v101
    %v104 = vsel %vm102, %v103, %v101
    %v105 = vclz %v104
    %v106 = vsub.s32 %v105, 2
    %vm107 = vcmp.gt.s32.totalorder 0, %v106
    %v108 = vsel %vm107, 0, %v106
    %v109 = vsub.s32 32, %v108
    %v110 = vshll.u32 %v101, %v108
    %v111 = vshrl.u32 %v93, %v109
    %v112 = vor.u32 %v110, %v111
    %v113 = vsub.s32 4294967266, %v108
    %v114 = vadd.s32 %v113, 127
    %v115 = vshll.u32 %v114, 23
    %v116 = vor.u32 4788187, %v115
    %v117 = vand.u32 2147483647, %v116
    %v119 = vcvt.s32.f32 %v112
    %v120 = vmul.f32 %v119, %v117
    %v121 = vxor.u32 %v120, 2147483648
    %v122 = vsel %vm39, %v121, %v120
    %v123 = vsub.s32 4, %v99
    %v124 = vsel %vm39, %v123, %v99
    %v125 = vsel %vm38, %v21, %v122
    %v126 = vsel %vm38, 0, %v124
    %v127 = vcosq.f32.pop %v125
    %v128 = vsinq.f32.pop %v125
    %vm129 = vweird.f32 %v21
    %v130 = vadd.s32 %v126, 3
    %v131 = vand.u32 %v130, 3
    %vm132 = vcmp.lt.s32.totalorder %v131, 2
    %vm133 = vcmp.eq.s32.totalorder %v131, 0
    %v134 = vxor.u32 %v128, 2147483648
    %v135 = vsel %vm133, %v127, %v134
    %vm136 = vcmp.eq.s32.totalorder %v131, 2
    %v137 = vxor.u32 %v127, 2147483648
    %v138 = vsel %vm136, %v137, %v128
    %v139 = vsel %vm132, %v135, %v138
    %v140 = vsel %vm129, nan, %v139
    %v141 = vand.u32 2147483647, %v22
    %vm142 = vcmp.le.f32.partialorder %v141, 0.7853982
    %vm143 = vcmp.lt.s32.totalorder %v22, 0
    %v144 = vand.u32 %v22, 2139095040
    %v145 = vshrl.u32 %v144, 23
    %v146 = vsub.s32 %v145, 127
    %v147 = vand.u32 2147483647, %v22
    %v148 = vand.u32 %v147, 8388607
    %v149 = vor.u32 %v148, 8388608
    %v150 = vsub.s32 0, %v149
    %v151 = vadd.s32 %v146, 1
    %vm152 = vcmp.gt.s32.totalorder %v151, 0
    %v153 = vsel %vm152, %v151, 0
    %v154 = vshrl.u32 %v153, 5
    %v155 = vand.u32 %v153, 31
    %v156 = vsub.s32 32, %v155
    %v157 = vshrl.u32 683565275, %v156
    %v158 = vshll.u32 683565275, %v155
    %v159 = vshrl.u32 2475754826, %v156
    %v160 = vor.u32 %v158, %v159
    %v161 = vshll.u32 2475754826, %v155
    %v162 = vshrl.u32 2131351028, %v156
    %v163 = vor.u32 %v161, %v162
    %v164 = vshll.u32 2131351028, %v155
    %v165 = vshrl.u32 2102212464, %v156
    %v166 = vor.u32 %v164, %v165
    %v167 = vshll.u32 2102212464, %v155
    %v168 = vshrl.u32 920167782, %v156
    %v169 = vor.u32 %v167, %v168
    %v170 = vshll.u32 920167782, %v155
    %v171 = vshrl.u32 1326507024, %v156
    %v172 = vor.u32 %v170, %v171
    %vm173 = vcmp.lt.s32.totalorder %v154, 1
    %vm174 = vcmp.lt.s32.totalorder %v154, 2
    %vm175 = vcmp.lt.s32.totalorder %v154, 3
    %vm176 = vcmp.lt.s32.totalorder %v154, 4
    %v177 = vsel %vm173, %v157, %v160
    %v178 = vsel %vm176, %v166, 2102212464
    %v179 = vsel %vm175, %v163, %v178
    %v180 = vsel %vm174, %v177, %v179
    %v181 = vsel %vm173, %v160, %v163
    %v182 = vsel %vm176, %v169, 920167782
    %v183 = vsel %vm175, %v166, %v182
    %v184 = vsel %vm174, %v181, %v183
    %v185 = vsel %vm173, %v163, %v166
    %v186 = vsel %vm176, %v172, 1326507024
    %v187 = vsel %vm175, %v169, %v186
    %v188 = vsel %vm174, %v185, %v187
    %v189 = vshll.u32 %v149, 8
    %v190 = vmul.u32.u64.compose %v189, %v188
    %v191 = vextract.low.u32 %v190
    %v192 = vextract.high.u32 %v190
    %v193 = vmul.u32.u64.compose %v189, %v184
    %v194 = vextract.low.u32 %v193
    %v195 = vextract.high.u32 %v193
    %v196 = vmul.u32 %v189, %v180
    %v197 = vadd.s32 %v192, %v194
    %vm198 = vc.u32 %v192, %v194
    %v199 = vadd.s32 %v195, 1
    %v200 = vsel %vm198, %v199, %v195
    %v201 = vadd.s32 %v196, %v200
    %v202 = vadd.s32 %v201, 536870912
    %v203 = vshrl.u32 %v202, 30
    %v204 = vshll.u32 %v203, 30
    %v205 = vsub.s32 %v201, %v204
    %vm206 = vcmp.lt.s32.totalorder %v205, 0
    %v207 = vsub.s32 0, %v205
    %v208 = vsel %vm206, %v207, %v205
    %v209 = vclz %v208
    %v210 = vsub.s32 %v209, 2
    %vm211 = vcmp.gt.s32.totalorder 0, %v210
    %v212 = vsel %vm211, 0, %v210
    %v213 = vsub.s32 32, %v212
    %v214 = vshll.u32 %v205, %v212
    %v215 = vshrl.u32 %v197, %v213
    %v216 = vor.u32 %v214, %v215
    %v217 = vsub.s32 4294967266, %v212
    %v218 = vadd.s32 %v217, 127
    %v219 = vshll.u32 %v218, 23
    %v220 = vor.u32 4788187, %v219
    %v221 = vand.u32 2147483647, %v220
    %v223 = vcvt.s32.f32 %v216
    %v224 = vmul.f32 %v223, %v221
    %v225 = vxor.u32 %v224, 2147483648
    %v226 = vsel %vm143, %v225, %v224
    %v227 = vsub.s32 4, %v203
    %v228 = vsel %vm143, %v227, %v203
    %v229 = vsel %vm142, %v22, %v226
    %v230 = vsel %vm142, 0, %v228
    %v231 = vcosq.f32.pop %v229
    %v232 = vsinq.f32.pop %v229
    %vm233 = vweird.f32 %v22
    %v234 = vadd.s32 %v230, 3
    %v235 = vand.u32 %v234, 3
    %vm236 = vcmp.lt.s32.totalorder %v235, 2
    %vm237 = vcmp.eq.s32.totalorder %v235, 0
    %v238 = vxor.u32 %v232, 2147483648
    %v239 = vsel %vm237, %v231, %v238
    %vm240 = vcmp.eq.s32.totalorder %v235, 2
    %v241 = vxor.u32 %v231, 2147483648
    %v242 = vsel %vm240, %v241, %v232
    %v243 = vsel %vm236, %v239, %v242
    %v244 = vsel %vm233, nan, %v243
    %v245 = vand.u32 2147483647, %v23
    %vm246 = vcmp.le.f32.partialorder %v245, 0.7853982
    %vm247 = vcmp.lt.s32.totalorder %v23, 0
    %v248 = vand.u32 %v23, 2139095040
    %v249 = vshrl.u32 %v248, 23
    %v250 = vsub.s32 %v249, 127
    %v251 = vand.u32 2147483647, %v23
    %v252 = vand.u32 %v251, 8388607
    %v253 = vor.u32 %v252, 8388608
    %v254 = vsub.s32 0, %v253
    %v255 = vadd.s32 %v250, 1
    %vm256 = vcmp.gt.s32.totalorder %v255, 0
    %v257 = vsel %vm256, %v255, 0
    %v258 = vshrl.u32 %v257, 5
    %v259 = vand.u32 %v257, 31
    %v260 = vsub.s32 32, %v259
    %v261 = vshrl.u32 683565275, %v260
    %v262 = vshll.u32 683565275, %v259
    %v263 = vshrl.u32 2475754826, %v260
    %v264 = vor.u32 %v262, %v263
    %v265 = vshll.u32 2475754826, %v259
    %v266 = vshrl.u32 2131351028, %v260
    %v267 = vor.u32 %v265, %v266
    %v268 = vshll.u32 2131351028, %v259
    %v269 = vshrl.u32 2102212464, %v260
    %v270 = vor.u32 %v268, %v269
    %v271 = vshll.u32 2102212464, %v259
    %v272 = vshrl.u32 920167782, %v260
    %v273 = vor.u32 %v271, %v272
    %v274 = vshll.u32 920167782, %v259
    %v275 = vshrl.u32 1326507024, %v260
    %v276 = vor.u32 %v274, %v275
    %vm277 = vcmp.lt.s32.totalorder %v258, 1
    %vm278 = vcmp.lt.s32.totalorder %v258, 2
    %vm279 = vcmp.lt.s32.totalorder %v258, 3
    %vm280 = vcmp.lt.s32.totalorder %v258, 4
    %v281 = vsel %vm277, %v261, %v264
    %v282 = vsel %vm280, %v270, 2102212464
    %v283 = vsel %vm279, %v267, %v282
    %v284 = vsel %vm278, %v281, %v283
    %v285 = vsel %vm277, %v264, %v267
    %v286 = vsel %vm280, %v273, 920167782
    %v287 = vsel %vm279, %v270, %v286
    %v288 = vsel %vm278, %v285, %v287
    %v289 = vsel %vm277, %v267, %v270
    %v290 = vsel %vm280, %v276, 1326507024
    %v291 = vsel %vm279, %v273, %v290
    %v292 = vsel %vm278, %v289, %v291
    %v293 = vshll.u32 %v253, 8
    %v294 = vmul.u32.u64.compose %v293, %v292
    %v295 = vextract.low.u32 %v294
    %v296 = vextract.high.u32 %v294
    %v297 = vmul.u32.u64.compose %v293, %v288
    %v298 = vextract.low.u32 %v297
    %v299 = vextract.high.u32 %v297
    %v300 = vmul.u32 %v293, %v284
    %v301 = vadd.s32 %v296, %v298
    %vm302 = vc.u32 %v296, %v298
    %v303 = vadd.s32 %v299, 1
    %v304 = vsel %vm302, %v303, %v299
    %v305 = vadd.s32 %v300, %v304
    %v306 = vadd.s32 %v305, 536870912
    %v307 = vshrl.u32 %v306, 30
    %v308 = vshll.u32 %v307, 30
    %v309 = vsub.s32 %v305, %v308
    %vm310 = vcmp.lt.s32.totalorder %v309, 0
    %v311 = vsub.s32 0, %v309
    %v312 = vsel %vm310, %v311, %v309
    %v313 = vclz %v312
    %v314 = vsub.s32 %v313, 2
    %vm315 = vcmp.gt.s32.totalorder 0, %v314
    %v316 = vsel %vm315, 0, %v314
    %v317 = vsub.s32 32, %v316
    %v318 = vshll.u32 %v309, %v316
    %v319 = vshrl.u32 %v301, %v317
    %v320 = vor.u32 %v318, %v319
    %v321 = vsub.s32 4294967266, %v316
    %v322 = vadd.s32 %v321, 127
    %v323 = vshll.u32 %v322, 23
    %v324 = vor.u32 4788187, %v323
    %v325 = vand.u32 2147483647, %v324
    %v327 = vcvt.s32.f32 %v320
    %v328 = vmul.f32 %v327, %v325
    %v329 = vxor.u32 %v328, 2147483648
    %v330 = vsel %vm247, %v329, %v328
    %v331 = vsub.s32 4, %v307
    %v332 = vsel %vm247, %v331, %v307
    %v333 = vsel %vm246, %v23, %v330
    %v334 = vsel %vm246, 0, %v332
    %v335 = vcosq.f32.pop %v333
    %v336 = vsinq.f32.pop %v333
    %vm337 = vweird.f32 %v23
    %v338 = vadd.s32 %v334, 3
    %v339 = vand.u32 %v338, 3
    %vm340 = vcmp.lt.s32.totalorder %v339, 2
    %vm341 = vcmp.eq.s32.totalorder %v339, 0
    %v342 = vxor.u32 %v336, 2147483648
    %v343 = vsel %vm341, %v335, %v342
    %vm344 = vcmp.eq.s32.totalorder %v339, 2
    %v345 = vxor.u32 %v335, 2147483648
    %v346 = vsel %vm344, %v345, %v336
    %v347 = vsel %vm340, %v343, %v346
    %v348 = vsel %vm337, nan, %v347
    %v349 = vand.u32 2147483647, %v24
    %vm350 = vcmp.le.f32.partialorder %v349, 0.7853982
    %vm351 = vcmp.lt.s32.totalorder %v24, 0
    %v352 = vand.u32 %v24, 2139095040
    %v353 = vshrl.u32 %v352, 23
    %v354 = vsub.s32 %v353, 127
    %v355 = vand.u32 2147483647, %v24
    %v356 = vand.u32 %v355, 8388607
    %v357 = vor.u32 %v356, 8388608
    %v358 = vsub.s32 0, %v357
    %v359 = vadd.s32 %v354, 1
    %vm360 = vcmp.gt.s32.totalorder %v359, 0
    %v361 = vsel %vm360, %v359, 0
    %v362 = vshrl.u32 %v361, 5
    %v363 = vand.u32 %v361, 31
    %v364 = vsub.s32 32, %v363
    %v365 = vshrl.u32 683565275, %v364
    %v366 = vshll.u32 683565275, %v363
    %v367 = vshrl.u32 2475754826, %v364
    %v368 = vor.u32 %v366, %v367
    %v369 = vshll.u32 2475754826, %v363
    %v370 = vshrl.u32 2131351028, %v364
    %v371 = vor.u32 %v369, %v370
    %v372 = vshll.u32 2131351028, %v363
    %v373 = vshrl.u32 2102212464, %v364
    %v374 = vor.u32 %v372, %v373
    %v375 = vshll.u32 2102212464, %v363
    %v376 = vshrl.u32 920167782, %v364
    %v377 = vor.u32 %v375, %v376
    %v378 = vshll.u32 920167782, %v363
    %v379 = vshrl.u32 1326507024, %v364
    %v380 = vor.u32 %v378, %v379
    %vm381 = vcmp.lt.s32.totalorder %v362, 1
    %vm382 = vcmp.lt.s32.totalorder %v362, 2
    %vm383 = vcmp.lt.s32.totalorder %v362, 3
    %vm384 = vcmp.lt.s32.totalorder %v362, 4
    %v385 = vsel %vm381, %v365, %v368
    %v386 = vsel %vm384, %v374, 2102212464
    %v387 = vsel %vm383, %v371, %v386
    %v388 = vsel %vm382, %v385, %v387
    %v389 = vsel %vm381, %v368, %v371
    %v390 = vsel %vm384, %v377, 920167782
    %v391 = vsel %vm383, %v374, %v390
    %v392 = vsel %vm382, %v389, %v391
    %v393 = vsel %vm381, %v371, %v374
    %v394 = vsel %vm384, %v380, 1326507024
    %v395 = vsel %vm383, %v377, %v394
    %v396 = vsel %vm382, %v393, %v395
    %v397 = vshll.u32 %v357, 8
    %v398 = vmul.u32.u64.compose %v397, %v396
    %v399 = vextract.low.u32 %v398
    %v400 = vextract.high.u32 %v398
    %v401 = vmul.u32.u64.compose %v397, %v392
    %v402 = vextract.low.u32 %v401
    %v403 = vextract.high.u32 %v401
    %v404 = vmul.u32 %v397, %v388
    %v405 = vadd.s32 %v400, %v402
    %vm406 = vc.u32 %v400, %v402
    %v407 = vadd.s32 %v403, 1
    %v408 = vsel %vm406, %v407, %v403
    %v409 = vadd.s32 %v404, %v408
    %v410 = vadd.s32 %v409, 536870912
    %v411 = vshrl.u32 %v410, 30
    %v412 = vshll.u32 %v411, 30
    %v413 = vsub.s32 %v409, %v412
    %vm414 = vcmp.lt.s32.totalorder %v413, 0
    %v415 = vsub.s32 0, %v413
    %v416 = vsel %vm414, %v415, %v413
    %v417 = vclz %v416
    %v418 = vsub.s32 %v417, 2
    %vm419 = vcmp.gt.s32.totalorder 0, %v418
    %v420 = vsel %vm419, 0, %v418
    %v421 = vsub.s32 32, %v420
    %v422 = vshll.u32 %v413, %v420
    %v423 = vshrl.u32 %v405, %v421
    %v424 = vor.u32 %v422, %v423
    %v425 = vsub.s32 4294967266, %v420
    %v426 = vadd.s32 %v425, 127
    %v427 = vshll.u32 %v426, 23
    %v428 = vor.u32 4788187, %v427
    %v429 = vand.u32 2147483647, %v428
    %v431 = vcvt.s32.f32 %v424
    %v432 = vmul.f32 %v431, %v429
    %v433 = vxor.u32 %v432, 2147483648
    %v434 = vsel %vm351, %v433, %v432
    %v435 = vsub.s32 4, %v411
    %v436 = vsel %vm351, %v435, %v411
    %v437 = vsel %vm350, %v24, %v434
    %v438 = vsel %vm350, 0, %v436
    %v439 = vcosq.f32.pop %v437
    %v440 = vsinq.f32.pop %v437
    %vm441 = vweird.f32 %v24
    %v442 = vadd.s32 %v438, 3
    %v443 = vand.u32 %v442, 3
    %vm444 = vcmp.lt.s32.totalorder %v443, 2
    %vm445 = vcmp.eq.s32.totalorder %v443, 0
    %v446 = vxor.u32 %v440, 2147483648
    %v447 = vsel %vm445, %v439, %v446
    %vm448 = vcmp.eq.s32.totalorder %v443, 2
    %v449 = vxor.u32 %v439, 2147483648
    %v450 = vsel %vm448, %v449, %v440
    %v451 = vsel %vm444, %v447, %v450
    %v452 = vsel %vm441, nan, %v451
    %v453 = vand.u32 2147483647, %v25
    %vm454 = vcmp.le.f32.partialorder %v453, 0.7853982
    %vm455 = vcmp.lt.s32.totalorder %v25, 0
    %v456 = vand.u32 %v25, 2139095040
    %v457 = vshrl.u32 %v456, 23
    %v458 = vsub.s32 %v457, 127
    %v459 = vand.u32 2147483647, %v25
    %v460 = vand.u32 %v459, 8388607
    %v461 = vor.u32 %v460, 8388608
    %v462 = vsub.s32 0, %v461
    %v463 = vadd.s32 %v458, 1
    %vm464 = vcmp.gt.s32.totalorder %v463, 0
    %v465 = vsel %vm464, %v463, 0
    %v466 = vshrl.u32 %v465, 5
    %v467 = vand.u32 %v465, 31
    %v468 = vsub.s32 32, %v467
    %v469 = vshrl.u32 683565275, %v468
    %v470 = vshll.u32 683565275, %v467
    %v471 = vshrl.u32 2475754826, %v468
    %v472 = vor.u32 %v470, %v471
    %v473 = vshll.u32 2475754826, %v467
    %v474 = vshrl.u32 2131351028, %v468
    %v475 = vor.u32 %v473, %v474
    %v476 = vshll.u32 2131351028, %v467
    %v477 = vshrl.u32 2102212464, %v468
    %v478 = vor.u32 %v476, %v477
    %v479 = vshll.u32 2102212464, %v467
    %v480 = vshrl.u32 920167782, %v468
    %v481 = vor.u32 %v479, %v480
    %v482 = vshll.u32 920167782, %v467
    %v483 = vshrl.u32 1326507024, %v468
    %v484 = vor.u32 %v482, %v483
    %vm485 = vcmp.lt.s32.totalorder %v466, 1
    %vm486 = vcmp.lt.s32.totalorder %v466, 2
    %vm487 = vcmp.lt.s32.totalorder %v466, 3
    %vm488 = vcmp.lt.s32.totalorder %v466, 4
    %v489 = vsel %vm485, %v469, %v472
    %v490 = vsel %vm488, %v478, 2102212464
    %v491 = vsel %vm487, %v475, %v490
    %v492 = vsel %vm486, %v489, %v491
    %v493 = vsel %vm485, %v472, %v475
    %v494 = vsel %vm488, %v481, 920167782
    %v495 = vsel %vm487, %v478, %v494
    %v496 = vsel %vm486, %v493, %v495
    %v497 = vsel %vm485, %v475, %v478
    %v498 = vsel %vm488, %v484, 1326507024
    %v499 = vsel %vm487, %v481, %v498
    %v500 = vsel %vm486, %v497, %v499
    %v501 = vshll.u32 %v461, 8
    %v502 = vmul.u32.u64.compose %v501, %v500
    %v503 = vextract.low.u32 %v502
    %v504 = vextract.high.u32 %v502
    %v505 = vmul.u32.u64.compose %v501, %v496
    %v506 = vextract.low.u32 %v505
    %v507 = vextract.high.u32 %v505
    %v508 = vmul.u32 %v501, %v492
    %v509 = vadd.s32 %v504, %v506
    %vm510 = vc.u32 %v504, %v506
    %v511 = vadd.s32 %v507, 1
    %v512 = vsel %vm510, %v511, %v507
    %v513 = vadd.s32 %v508, %v512
    %v514 = vadd.s32 %v513, 536870912
    %v515 = vshrl.u32 %v514, 30
    %v516 = vshll.u32 %v515, 30
    %v517 = vsub.s32 %v513, %v516
    %vm518 = vcmp.lt.s32.totalorder %v517, 0
    %v519 = vsub.s32 0, %v517
    %v520 = vsel %vm518, %v519, %v517
    %v521 = vclz %v520
    %v522 = vsub.s32 %v521, 2
    %vm523 = vcmp.gt.s32.totalorder 0, %v522
    %v524 = vsel %vm523, 0, %v522
    %v525 = vsub.s32 32, %v524
    %v526 = vshll.u32 %v517, %v524
    %v527 = vshrl.u32 %v509, %v525
    %v528 = vor.u32 %v526, %v527
    %v529 = vsub.s32 4294967266, %v524
    %v530 = vadd.s32 %v529, 127
    %v531 = vshll.u32 %v530, 23
    %v532 = vor.u32 4788187, %v531
    %v533 = vand.u32 2147483647, %v532
    %v535 = vcvt.s32.f32 %v528
    %v536 = vmul.f32 %v535, %v533
    %v537 = vxor.u32 %v536, 2147483648
    %v538 = vsel %vm455, %v537, %v536
    %v539 = vsub.s32 4, %v515
    %v540 = vsel %vm455, %v539, %v515
    %v541 = vsel %vm454, %v25, %v538
    %v542 = vsel %vm454, 0, %v540
    %v543 = vcosq.f32.pop %v541
    %v544 = vsinq.f32.pop %v541
    %vm545 = vweird.f32 %v25
    %v546 = vadd.s32 %v542, 3
    %v547 = vand.u32 %v546, 3
    %vm548 = vcmp.lt.s32.totalorder %v547, 2
    %vm549 = vcmp.eq.s32.totalorder %v547, 0
    %v550 = vxor.u32 %v544, 2147483648
    %v551 = vsel %vm549, %v543, %v550
    %vm552 = vcmp.eq.s32.totalorder %v547, 2
    %v553 = vxor.u32 %v543, 2147483648
    %v554 = vsel %vm552, %v553, %v544
    %v555 = vsel %vm548, %v551, %v554
    %v556 = vsel %vm545, nan, %v555
    %v557 = vand.u32 2147483647, %v26
    %vm558 = vcmp.le.f32.partialorder %v557, 0.7853982
    %vm559 = vcmp.lt.s32.totalorder %v26, 0
    %v560 = vand.u32 %v26, 2139095040
    %v561 = vshrl.u32 %v560, 23
    %v562 = vsub.s32 %v561, 127
    %v563 = vand.u32 2147483647, %v26
    %v564 = vand.u32 %v563, 8388607
    %v565 = vor.u32 %v564, 8388608
    %v566 = vsub.s32 0, %v565
    %v567 = vadd.s32 %v562, 1
    %vm568 = vcmp.gt.s32.totalorder %v567, 0
    %v569 = vsel %vm568, %v567, 0
    %v570 = vshrl.u32 %v569, 5
    %v571 = vand.u32 %v569, 31
    %v572 = vsub.s32 32, %v571
    %v573 = vshrl.u32 683565275, %v572
    %v574 = vshll.u32 683565275, %v571
    %v575 = vshrl.u32 2475754826, %v572
    %v576 = vor.u32 %v574, %v575
    %v577 = vshll.u32 2475754826, %v571
    %v578 = vshrl.u32 2131351028, %v572
    %v579 = vor.u32 %v577, %v578
    %v580 = vshll.u32 2131351028, %v571
    %v581 = vshrl.u32 2102212464, %v572
    %v582 = vor.u32 %v580, %v581
    %v583 = vshll.u32 2102212464, %v571
    %v584 = vshrl.u32 920167782, %v572
    %v585 = vor.u32 %v583, %v584
    %v586 = vshll.u32 920167782, %v571
    %v587 = vshrl.u32 1326507024, %v572
    %v588 = vor.u32 %v586, %v587
    %vm589 = vcmp.lt.s32.totalorder %v570, 1
    %vm590 = vcmp.lt.s32.totalorder %v570, 2
    %vm591 = vcmp.lt.s32.totalorder %v570, 3
    %vm592 = vcmp.lt.s32.totalorder %v570, 4
    %v593 = vsel %vm589, %v573, %v576
    %v594 = vsel %vm592, %v582, 2102212464
    %v595 = vsel %vm591, %v579, %v594
    %v596 = vsel %vm590, %v593, %v595
    %v597 = vsel %vm589, %v576, %v579
    %v598 = vsel %vm592, %v585, 920167782
    %v599 = vsel %vm591, %v582, %v598
    %v600 = vsel %vm590, %v597, %v599
    %v601 = vsel %vm589, %v579, %v582
    %v602 = vsel %vm592, %v588, 1326507024
    %v603 = vsel %vm591, %v585, %v602
    %v604 = vsel %vm590, %v601, %v603
    %v605 = vshll.u32 %v565, 8
    %v606 = vmul.u32.u64.compose %v605, %v604
    %v607 = vextract.low.u32 %v606
    %v608 = vextract.high.u32 %v606
    %v609 = vmul.u32.u64.compose %v605, %v600
    %v610 = vextract.low.u32 %v609
    %v611 = vextract.high.u32 %v609
    %v612 = vmul.u32 %v605, %v596
    %v613 = vadd.s32 %v608, %v610
    %vm614 = vc.u32 %v608, %v610
    %v615 = vadd.s32 %v611, 1
    %v616 = vsel %vm614, %v615, %v611
    %v617 = vadd.s32 %v612, %v616
    %v618 = vadd.s32 %v617, 536870912
    %v619 = vshrl.u32 %v618, 30
    %v620 = vshll.u32 %v619, 30
    %v621 = vsub.s32 %v617, %v620
    %vm622 = vcmp.lt.s32.totalorder %v621, 0
    %v623 = vsub.s32 0, %v621
    %v624 = vsel %vm622, %v623, %v621
    %v625 = vclz %v624
    %v626 = vsub.s32 %v625, 2
    %vm627 = vcmp.gt.s32.totalorder 0, %v626
    %v628 = vsel %vm627, 0, %v626
    %v629 = vsub.s32 32, %v628
    %v630 = vshll.u32 %v621, %v628
    %v631 = vshrl.u32 %v613, %v629
    %v632 = vor.u32 %v630, %v631
    %v633 = vsub.s32 4294967266, %v628
    %v634 = vadd.s32 %v633, 127
    %v635 = vshll.u32 %v634, 23
    %v636 = vor.u32 4788187, %v635
    %v637 = vand.u32 2147483647, %v636
    %v639 = vcvt.s32.f32 %v632
    %v640 = vmul.f32 %v639, %v637
    %v641 = vxor.u32 %v640, 2147483648
    %v642 = vsel %vm559, %v641, %v640
    %v643 = vsub.s32 4, %v619
    %v644 = vsel %vm559, %v643, %v619
    %v645 = vsel %vm558, %v26, %v642
    %v646 = vsel %vm558, 0, %v644
    %v647 = vcosq.f32.pop %v645
    %v648 = vsinq.f32.pop %v645
    %vm649 = vweird.f32 %v26
    %v650 = vadd.s32 %v646, 3
    %v651 = vand.u32 %v650, 3
    %vm652 = vcmp.lt.s32.totalorder %v651, 2
    %vm653 = vcmp.eq.s32.totalorder %v651, 0
    %v654 = vxor.u32 %v648, 2147483648
    %v655 = vsel %vm653, %v647, %v654
    %vm656 = vcmp.eq.s32.totalorder %v651, 2
    %v657 = vxor.u32 %v647, 2147483648
    %v658 = vsel %vm656, %v657, %v648
    %v659 = vsel %vm652, %v655, %v658
    %v660 = vsel %vm649, nan, %v659
    %v661 = vand.u32 2147483647, %v27
    %vm662 = vcmp.le.f32.partialorder %v661, 0.7853982
    %vm663 = vcmp.lt.s32.totalorder %v27, 0
    %v664 = vand.u32 %v27, 2139095040
    %v665 = vshrl.u32 %v664, 23
    %v666 = vsub.s32 %v665, 127
    %v667 = vand.u32 2147483647, %v27
    %v668 = vand.u32 %v667, 8388607
    %v669 = vor.u32 %v668, 8388608
    %v670 = vsub.s32 0, %v669
    %v671 = vadd.s32 %v666, 1
    %vm672 = vcmp.gt.s32.totalorder %v671, 0
    %v673 = vsel %vm672, %v671, 0
    %v674 = vshrl.u32 %v673, 5
    %v675 = vand.u32 %v673, 31
    %v676 = vsub.s32 32, %v675
    %v677 = vshrl.u32 683565275, %v676
    %v678 = vshll.u32 683565275, %v675
    %v679 = vshrl.u32 2475754826, %v676
    %v680 = vor.u32 %v678, %v679
    %v681 = vshll.u32 2475754826, %v675
    %v682 = vshrl.u32 2131351028, %v676
    %v683 = vor.u32 %v681, %v682
    %v684 = vshll.u32 2131351028, %v675
    %v685 = vshrl.u32 2102212464, %v676
    %v686 = vor.u32 %v684, %v685
    %v687 = vshll.u32 2102212464, %v675
    %v688 = vshrl.u32 920167782, %v676
    %v689 = vor.u32 %v687, %v688
    %v690 = vshll.u32 920167782, %v675
    %v691 = vshrl.u32 1326507024, %v676
    %v692 = vor.u32 %v690, %v691
    %vm693 = vcmp.lt.s32.totalorder %v674, 1
    %vm694 = vcmp.lt.s32.totalorder %v674, 2
    %vm695 = vcmp.lt.s32.totalorder %v674, 3
    %vm696 = vcmp.lt.s32.totalorder %v674, 4
    %v697 = vsel %vm693, %v677, %v680
    %v698 = vsel %vm696, %v686, 2102212464
    %v699 = vsel %vm695, %v683, %v698
    %v700 = vsel %vm694, %v697, %v699
    %v701 = vsel %vm693, %v680, %v683
    %v702 = vsel %vm696, %v689, 920167782
    %v703 = vsel %vm695, %v686, %v702
    %v704 = vsel %vm694, %v701, %v703
    %v705 = vsel %vm693, %v683, %v686
    %v706 = vsel %vm696, %v692, 1326507024
    %v707 = vsel %vm695, %v689, %v706
    %v708 = vsel %vm694, %v705, %v707
    %v709 = vshll.u32 %v669, 8
    %v710 = vmul.u32.u64.compose %v709, %v708
    %v711 = vextract.low.u32 %v710
    %v712 = vextract.high.u32 %v710
    %v713 = vmul.u32.u64.compose %v709, %v704
    %v714 = vextract.low.u32 %v713
    %v715 = vextract.high.u32 %v713
    %v716 = vmul.u32 %v709, %v700
    %v717 = vadd.s32 %v712, %v714
    %vm718 = vc.u32 %v712, %v714
    %v719 = vadd.s32 %v715, 1
    %v720 = vsel %vm718, %v719, %v715
    %v721 = vadd.s32 %v716, %v720
    %v722 = vadd.s32 %v721, 536870912
    %v723 = vshrl.u32 %v722, 30
    %v724 = vshll.u32 %v723, 30
    %v725 = vsub.s32 %v721, %v724
    %vm726 = vcmp.lt.s32.totalorder %v725, 0
    %v727 = vsub.s32 0, %v725
    %v728 = vsel %vm726, %v727, %v725
    %v729 = vclz %v728
    %v730 = vsub.s32 %v729, 2
    %vm731 = vcmp.gt.s32.totalorder 0, %v730
    %v732 = vsel %vm731, 0, %v730
    %v733 = vsub.s32 32, %v732
    %v734 = vshll.u32 %v725, %v732
    %v735 = vshrl.u32 %v717, %v733
    %v736 = vor.u32 %v734, %v735
    %v737 = vsub.s32 4294967266, %v732
    %v738 = vadd.s32 %v737, 127
    %v739 = vshll.u32 %v738, 23
    %v740 = vor.u32 4788187, %v739
    %v741 = vand.u32 2147483647, %v740
    %v743 = vcvt.s32.f32 %v736
    %v744 = vmul.f32 %v743, %v741
    %v745 = vxor.u32 %v744, 2147483648
    %v746 = vsel %vm663, %v745, %v744
    %v747 = vsub.s32 4, %v723
    %v748 = vsel %vm663, %v747, %v723
    %v749 = vsel %vm662, %v27, %v746
    %v750 = vsel %vm662, 0, %v748
    %v751 = vcosq.f32.pop %v749
    %v752 = vsinq.f32.pop %v749
    %vm753 = vweird.f32 %v27
    %v754 = vadd.s32 %v750, 3
    %v755 = vand.u32 %v754, 3
    %vm756 = vcmp.lt.s32.totalorder %v755, 2
    %vm757 = vcmp.eq.s32.totalorder %v755, 0
    %v758 = vxor.u32 %v752, 2147483648
    %v759 = vsel %vm757, %v751, %v758
    %vm760 = vcmp.eq.s32.totalorder %v755, 2
    %v761 = vxor.u32 %v751, 2147483648
    %v762 = vsel %vm760, %v761, %v752
    %v763 = vsel %vm756, %v759, %v762
    %v764 = vsel %vm753, nan, %v763
    %v765 = vand.u32 2147483647, %v28
    %vm766 = vcmp.le.f32.partialorder %v765, 0.7853982
    %vm767 = vcmp.lt.s32.totalorder %v28, 0
    %v768 = vand.u32 %v28, 2139095040
    %v769 = vshrl.u32 %v768, 23
    %v770 = vsub.s32 %v769, 127
    %v771 = vand.u32 2147483647, %v28
    %v772 = vand.u32 %v771, 8388607
    %v773 = vor.u32 %v772, 8388608
    %v774 = vsub.s32 0, %v773
    %v775 = vadd.s32 %v770, 1
    %vm776 = vcmp.gt.s32.totalorder %v775, 0
    %v777 = vsel %vm776, %v775, 0
    %v778 = vshrl.u32 %v777, 5
    %v779 = vand.u32 %v777, 31
    %v780 = vsub.s32 32, %v779
    %v781 = vshrl.u32 683565275, %v780
    %v782 = vshll.u32 683565275, %v779
    %v783 = vshrl.u32 2475754826, %v780
    %v784 = vor.u32 %v782, %v783
    %v785 = vshll.u32 2475754826, %v779
    %v786 = vshrl.u32 2131351028, %v780
    %v787 = vor.u32 %v785, %v786
    %v788 = vshll.u32 2131351028, %v779
    %v789 = vshrl.u32 2102212464, %v780
    %v790 = vor.u32 %v788, %v789
    %v791 = vshll.u32 2102212464, %v779
    %v792 = vshrl.u32 920167782, %v780
    %v793 = vor.u32 %v791, %v792
    %v794 = vshll.u32 920167782, %v779
    %v795 = vshrl.u32 1326507024, %v780
    %v796 = vor.u32 %v794, %v795
    %vm797 = vcmp.lt.s32.totalorder %v778, 1
    %vm798 = vcmp.lt.s32.totalorder %v778, 2
    %vm799 = vcmp.lt.s32.totalorder %v778, 3
    %vm800 = vcmp.lt.s32.totalorder %v778, 4
    %v801 = vsel %vm797, %v781, %v784
    %v802 = vsel %vm800, %v790, 2102212464
    %v803 = vsel %vm799, %v787, %v802
    %v804 = vsel %vm798, %v801, %v803
    %v805 = vsel %vm797, %v784, %v787
    %v806 = vsel %vm800, %v793, 920167782
    %v807 = vsel %vm799, %v790, %v806
    %v808 = vsel %vm798, %v805, %v807
    %v809 = vsel %vm797, %v787, %v790
    %v810 = vsel %vm800, %v796, 1326507024
    %v811 = vsel %vm799, %v793, %v810
    %v812 = vsel %vm798, %v809, %v811
    %v813 = vshll.u32 %v773, 8
    %v814 = vmul.u32.u64.compose %v813, %v812
    %v815 = vextract.low.u32 %v814
    %v816 = vextract.high.u32 %v814
    %v817 = vmul.u32.u64.compose %v813, %v808
    %v818 = vextract.low.u32 %v817
    %v819 = vextract.high.u32 %v817
    %v820 = vmul.u32 %v813, %v804
    %v821 = vadd.s32 %v816, %v818
    %vm822 = vc.u32 %v816, %v818
    %v823 = vadd.s32 %v819, 1
    %v824 = vsel %vm822, %v823, %v819
    %v825 = vadd.s32 %v820, %v824
    %v826 = vadd.s32 %v825, 536870912
    %v827 = vshrl.u32 %v826, 30
    %v828 = vshll.u32 %v827, 30
    %v829 = vsub.s32 %v825, %v828
    %vm830 = vcmp.lt.s32.totalorder %v829, 0
    %v831 = vsub.s32 0, %v829
    %v832 = vsel %vm830, %v831, %v829
    %v833 = vclz %v832
    %v834 = vsub.s32 %v833, 2
    %vm835 = vcmp.gt.s32.totalorder 0, %v834
    %v836 = vsel %vm835, 0, %v834
    %v837 = vsub.s32 32, %v836
    %v838 = vshll.u32 %v829, %v836
    %v839 = vshrl.u32 %v821, %v837
    %v840 = vor.u32 %v838, %v839
    %v841 = vsub.s32 4294967266, %v836
    %v842 = vadd.s32 %v841, 127
    %v843 = vshll.u32 %v842, 23
    %v844 = vor.u32 4788187, %v843
    %v845 = vand.u32 2147483647, %v844
    %v847 = vcvt.s32.f32 %v840
    %v848 = vmul.f32 %v847, %v845
    %v849 = vxor.u32 %v848, 2147483648
    %v850 = vsel %vm767, %v849, %v848
    %v851 = vsub.s32 4, %v827
    %v852 = vsel %vm767, %v851, %v827
    %v853 = vsel %vm766, %v28, %v850
    %v854 = vsel %vm766, 0, %v852
    %v855 = vcosq.f32.pop %v853
    %v856 = vsinq.f32.pop %v853
    %vm857 = vweird.f32 %v28
    %v858 = vadd.s32 %v854, 3
    %v859 = vand.u32 %v858, 3
    %vm860 = vcmp.lt.s32.totalorder %v859, 2
    %vm861 = vcmp.eq.s32.totalorder %v859, 0
    %v862 = vxor.u32 %v856, 2147483648
    %v863 = vsel %vm861, %v855, %v862
    %vm864 = vcmp.eq.s32.totalorder %v859, 2
    %v865 = vxor.u32 %v855, 2147483648
    %v866 = vsel %vm864, %v865, %v856
    %v867 = vsel %vm860, %v863, %v866
    %v868 = vsel %vm857, nan, %v867
    %v869 = vand.u32 2147483647, %v21
    %vm870 = vcmp.le.f32.partialorder %v869, 0.7853982
    %vm871 = vcmp.lt.s32.totalorder %v21, 0
    %v872 = vand.u32 %v21, 2139095040
    %v873 = vshrl.u32 %v872, 23
    %v874 = vsub.s32 %v873, 127
    %v875 = vand.u32 2147483647, %v21
    %v876 = vand.u32 %v875, 8388607
    %v877 = vor.u32 %v876, 8388608
    %v878 = vsub.s32 0, %v877
    %v879 = vadd.s32 %v874, 1
    %vm880 = vcmp.gt.s32.totalorder %v879, 0
    %v881 = vsel %vm880, %v879, 0
    %v882 = vshrl.u32 %v881, 5
    %v883 = vand.u32 %v881, 31
    %v884 = vsub.s32 32, %v883
    %v885 = vshrl.u32 683565275, %v884
    %v886 = vshll.u32 683565275, %v883
    %v887 = vshrl.u32 2475754826, %v884
    %v888 = vor.u32 %v886, %v887
    %v889 = vshll.u32 2475754826, %v883
    %v890 = vshrl.u32 2131351028, %v884
    %v891 = vor.u32 %v889, %v890
    %v892 = vshll.u32 2131351028, %v883
    %v893 = vshrl.u32 2102212464, %v884
    %v894 = vor.u32 %v892, %v893
    %v895 = vshll.u32 2102212464, %v883
    %v896 = vshrl.u32 920167782, %v884
    %v897 = vor.u32 %v895, %v896
    %v898 = vshll.u32 920167782, %v883
    %v899 = vshrl.u32 1326507024, %v884
    %v900 = vor.u32 %v898, %v899
    %vm901 = vcmp.lt.s32.totalorder %v882, 1
    %vm902 = vcmp.lt.s32.totalorder %v882, 2
    %vm903 = vcmp.lt.s32.totalorder %v882, 3
    %vm904 = vcmp.lt.s32.totalorder %v882, 4
    %v905 = vsel %vm901, %v885, %v888
    %v906 = vsel %vm904, %v894, 2102212464
    %v907 = vsel %vm903, %v891, %v906
    %v908 = vsel %vm902, %v905, %v907
    %v909 = vsel %vm901, %v888, %v891
    %v910 = vsel %vm904, %v897, 920167782
    %v911 = vsel %vm903, %v894, %v910
    %v912 = vsel %vm902, %v909, %v911
    %v913 = vsel %vm901, %v891, %v894
    %v914 = vsel %vm904, %v900, 1326507024
    %v915 = vsel %vm903, %v897, %v914
    %v916 = vsel %vm902, %v913, %v915
    %v917 = vshll.u32 %v877, 8
    %v918 = vmul.u32.u64.compose %v917, %v916
    %v919 = vextract.low.u32 %v918
    %v920 = vextract.high.u32 %v918
    %v921 = vmul.u32.u64.compose %v917, %v912
    %v922 = vextract.low.u32 %v921
    %v923 = vextract.high.u32 %v921
    %v924 = vmul.u32 %v917, %v908
    %v925 = vadd.s32 %v920, %v922
    %vm926 = vc.u32 %v920, %v922
    %v927 = vadd.s32 %v923, 1
    %v928 = vsel %vm926, %v927, %v923
    %v929 = vadd.s32 %v924, %v928
    %v930 = vadd.s32 %v929, 536870912
    %v931 = vshrl.u32 %v930, 30
    %v932 = vshll.u32 %v931, 30
    %v933 = vsub.s32 %v929, %v932
    %vm934 = vcmp.lt.s32.totalorder %v933, 0
    %v935 = vsub.s32 0, %v933
    %v936 = vsel %vm934, %v935, %v933
    %v937 = vclz %v936
    %v938 = vsub.s32 %v937, 2
    %vm939 = vcmp.gt.s32.totalorder 0, %v938
    %v940 = vsel %vm939, 0, %v938
    %v941 = vsub.s32 32, %v940
    %v942 = vshll.u32 %v933, %v940
    %v943 = vshrl.u32 %v925, %v941
    %v944 = vor.u32 %v942, %v943
    %v945 = vsub.s32 4294967266, %v940
    %v946 = vadd.s32 %v945, 127
    %v947 = vshll.u32 %v946, 23
    %v948 = vor.u32 4788187, %v947
    %v949 = vand.u32 2147483647, %v948
    %v951 = vcvt.s32.f32 %v944
    %v952 = vmul.f32 %v951, %v949
    %v953 = vxor.u32 %v952, 2147483648
    %v954 = vsel %vm871, %v953, %v952
    %v955 = vsub.s32 4, %v931
    %v956 = vsel %vm871, %v955, %v931
    %v957 = vsel %vm870, %v21, %v954
    %v958 = vsel %vm870, 0, %v956
    %v959 = vcosq.f32.pop %v957
    %v960 = vsinq.f32.pop %v957
    %vm961 = vweird.f32 %v21
    %v962 = vand.u32 %v958, 3
    %vm963 = vcmp.lt.s32.totalorder %v962, 2
    %vm964 = vcmp.eq.s32.totalorder %v962, 0
    %v965 = vxor.u32 %v960, 2147483648
    %v966 = vsel %vm964, %v959, %v965
    %vm967 = vcmp.eq.s32.totalorder %v962, 2
    %v968 = vxor.u32 %v959, 2147483648
    %v969 = vsel %vm967, %v968, %v960
    %v970 = vsel %vm963, %v966, %v969
    %v971 = vsel %vm961, nan, %v970
    %v972 = vand.u32 2147483647, %v22
    %vm973 = vcmp.le.f32.partialorder %v972, 0.7853982
    %vm974 = vcmp.lt.s32.totalorder %v22, 0
    %v975 = vand.u32 %v22, 2139095040
    %v976 = vshrl.u32 %v975, 23
    %v977 = vsub.s32 %v976, 127
    %v978 = vand.u32 2147483647, %v22
    %v979 = vand.u32 %v978, 8388607
    %v980 = vor.u32 %v979, 8388608
    %v981 = vsub.s32 0, %v980
    %v982 = vadd.s32 %v977, 1
    %vm983 = vcmp.gt.s32.totalorder %v982, 0
    %v984 = vsel %vm983, %v982, 0
    %v985 = vshrl.u32 %v984, 5
    %v986 = vand.u32 %v984, 31
    %v987 = vsub.s32 32, %v986
    %v988 = vshrl.u32 683565275, %v987
    %v989 = vshll.u32 683565275, %v986
    %v990 = vshrl.u32 2475754826, %v987
    %v991 = vor.u32 %v989, %v990
    %v992 = vshll.u32 2475754826, %v986
    %v993 = vshrl.u32 2131351028, %v987
    %v994 = vor.u32 %v992, %v993
    %v995 = vshll.u32 2131351028, %v986
    %v996 = vshrl.u32 2102212464, %v987
    %v997 = vor.u32 %v995, %v996
    %v998 = vshll.u32 2102212464, %v986
    %v999 = vshrl.u32 920167782, %v987
    %v1000 = vor.u32 %v998, %v999
    %v1001 = vshll.u32 920167782, %v986
    %v1002 = vshrl.u32 1326507024, %v987
    %v1003 = vor.u32 %v1001, %v1002
    %vm1004 = vcmp.lt.s32.totalorder %v985, 1
    %vm1005 = vcmp.lt.s32.totalorder %v985, 2
    %vm1006 = vcmp.lt.s32.totalorder %v985, 3
    %vm1007 = vcmp.lt.s32.totalorder %v985, 4
    %v1008 = vsel %vm1004, %v988, %v991
    %v1009 = vsel %vm1007, %v997, 2102212464
    %v1010 = vsel %vm1006, %v994, %v1009
    %v1011 = vsel %vm1005, %v1008, %v1010
    %v1012 = vsel %vm1004, %v991, %v994
    %v1013 = vsel %vm1007, %v1000, 920167782
    %v1014 = vsel %vm1006, %v997, %v1013
    %v1015 = vsel %vm1005, %v1012, %v1014
    %v1016 = vsel %vm1004, %v994, %v997
    %v1017 = vsel %vm1007, %v1003, 1326507024
    %v1018 = vsel %vm1006, %v1000, %v1017
    %v1019 = vsel %vm1005, %v1016, %v1018
    %v1020 = vshll.u32 %v980, 8
    %v1021 = vmul.u32.u64.compose %v1020, %v1019
    %v1022 = vextract.low.u32 %v1021
    %v1023 = vextract.high.u32 %v1021
    %v1024 = vmul.u32.u64.compose %v1020, %v1015
    %v1025 = vextract.low.u32 %v1024
    %v1026 = vextract.high.u32 %v1024
    %v1027 = vmul.u32 %v1020, %v1011
    %v1028 = vadd.s32 %v1023, %v1025
    %vm1029 = vc.u32 %v1023, %v1025
    %v1030 = vadd.s32 %v1026, 1
    %v1031 = vsel %vm1029, %v1030, %v1026
    %v1032 = vadd.s32 %v1027, %v1031
    %v1033 = vadd.s32 %v1032, 536870912
    %v1034 = vshrl.u32 %v1033, 30
    %v1035 = vshll.u32 %v1034, 30
    %v1036 = vsub.s32 %v1032, %v1035
    %vm1037 = vcmp.lt.s32.totalorder %v1036, 0
    %v1038 = vsub.s32 0, %v1036
    %v1039 = vsel %vm1037, %v1038, %v1036
    %v1040 = vclz %v1039
    %v1041 = vsub.s32 %v1040, 2
    %vm1042 = vcmp.gt.s32.totalorder 0, %v1041
    %v1043 = vsel %vm1042, 0, %v1041
    %v1044 = vsub.s32 32, %v1043
    %v1045 = vshll.u32 %v1036, %v1043
    %v1046 = vshrl.u32 %v1028, %v1044
    %v1047 = vor.u32 %v1045, %v1046
    %v1048 = vsub.s32 4294967266, %v1043
    %v1049 = vadd.s32 %v1048, 127
    %v1050 = vshll.u32 %v1049, 23
    %v1051 = vor.u32 4788187, %v1050
    %v1052 = vand.u32 2147483647, %v1051
    %v1054 = vcvt.s32.f32 %v1047
    %v1055 = vmul.f32 %v1054, %v1052
    %v1056 = vxor.u32 %v1055, 2147483648
    %v1057 = vsel %vm974, %v1056, %v1055
    %v1058 = vsub.s32 4, %v1034
    %v1059 = vsel %vm974, %v1058, %v1034
    %v1060 = vsel %vm973, %v22, %v1057
    %v1061 = vsel %vm973, 0, %v1059
    %v1062 = vcosq.f32.pop %v1060
    %v1063 = vsinq.f32.pop %v1060
    %vm1064 = vweird.f32 %v22
    %v1065 = vand.u32 %v1061, 3
    %vm1066 = vcmp.lt.s32.totalorder %v1065, 2
    %vm1067 = vcmp.eq.s32.totalorder %v1065, 0
    %v1068 = vxor.u32 %v1063, 2147483648
    %v1069 = vsel %vm1067, %v1062, %v1068
    %vm1070 = vcmp.eq.s32.totalorder %v1065, 2
    %v1071 = vxor.u32 %v1062, 2147483648
    %v1072 = vsel %vm1070, %v1071, %v1063
    %v1073 = vsel %vm1066, %v1069, %v1072
    %v1074 = vsel %vm1064, nan, %v1073
    %v1075 = vand.u32 2147483647, %v23
    %vm1076 = vcmp.le.f32.partialorder %v1075, 0.7853982
    %vm1077 = vcmp.lt.s32.totalorder %v23, 0
    %v1078 = vand.u32 %v23, 2139095040
    %v1079 = vshrl.u32 %v1078, 23
    %v1080 = vsub.s32 %v1079, 127
    %v1081 = vand.u32 2147483647, %v23
    %v1082 = vand.u32 %v1081, 8388607
    %v1083 = vor.u32 %v1082, 8388608
    %v1084 = vsub.s32 0, %v1083
    %v1085 = vadd.s32 %v1080, 1
    %vm1086 = vcmp.gt.s32.totalorder %v1085, 0
    %v1087 = vsel %vm1086, %v1085, 0
    %v1088 = vshrl.u32 %v1087, 5
    %v1089 = vand.u32 %v1087, 31
    %v1090 = vsub.s32 32, %v1089
    %v1091 = vshrl.u32 683565275, %v1090
    %v1092 = vshll.u32 683565275, %v1089
    %v1093 = vshrl.u32 2475754826, %v1090
    %v1094 = vor.u32 %v1092, %v1093
    %v1095 = vshll.u32 2475754826, %v1089
    %v1096 = vshrl.u32 2131351028, %v1090
    %v1097 = vor.u32 %v1095, %v1096
    %v1098 = vshll.u32 2131351028, %v1089
    %v1099 = vshrl.u32 2102212464, %v1090
    %v1100 = vor.u32 %v1098, %v1099
    %v1101 = vshll.u32 2102212464, %v1089
    %v1102 = vshrl.u32 920167782, %v1090
    %v1103 = vor.u32 %v1101, %v1102
    %v1104 = vshll.u32 920167782, %v1089
    %v1105 = vshrl.u32 1326507024, %v1090
    %v1106 = vor.u32 %v1104, %v1105
    %vm1107 = vcmp.lt.s32.totalorder %v1088, 1
    %vm1108 = vcmp.lt.s32.totalorder %v1088, 2
    %vm1109 = vcmp.lt.s32.totalorder %v1088, 3
    %vm1110 = vcmp.lt.s32.totalorder %v1088, 4
    %v1111 = vsel %vm1107, %v1091, %v1094
    %v1112 = vsel %vm1110, %v1100, 2102212464
    %v1113 = vsel %vm1109, %v1097, %v1112
    %v1114 = vsel %vm1108, %v1111, %v1113
    %v1115 = vsel %vm1107, %v1094, %v1097
    %v1116 = vsel %vm1110, %v1103, 920167782
    %v1117 = vsel %vm1109, %v1100, %v1116
    %v1118 = vsel %vm1108, %v1115, %v1117
    %v1119 = vsel %vm1107, %v1097, %v1100
    %v1120 = vsel %vm1110, %v1106, 1326507024
    %v1121 = vsel %vm1109, %v1103, %v1120
    %v1122 = vsel %vm1108, %v1119, %v1121
    %v1123 = vshll.u32 %v1083, 8
    %v1124 = vmul.u32.u64.compose %v1123, %v1122
    %v1125 = vextract.low.u32 %v1124
    %v1126 = vextract.high.u32 %v1124
    %v1127 = vmul.u32.u64.compose %v1123, %v1118
    %v1128 = vextract.low.u32 %v1127
    %v1129 = vextract.high.u32 %v1127
    %v1130 = vmul.u32 %v1123, %v1114
    %v1131 = vadd.s32 %v1126, %v1128
    %vm1132 = vc.u32 %v1126, %v1128
    %v1133 = vadd.s32 %v1129, 1
    %v1134 = vsel %vm1132, %v1133, %v1129
    %v1135 = vadd.s32 %v1130, %v1134
    %v1136 = vadd.s32 %v1135, 536870912
    %v1137 = vshrl.u32 %v1136, 30
    %v1138 = vshll.u32 %v1137, 30
    %v1139 = vsub.s32 %v1135, %v1138
    %vm1140 = vcmp.lt.s32.totalorder %v1139, 0
    %v1141 = vsub.s32 0, %v1139
    %v1142 = vsel %vm1140, %v1141, %v1139
    %v1143 = vclz %v1142
    %v1144 = vsub.s32 %v1143, 2
    %vm1145 = vcmp.gt.s32.totalorder 0, %v1144
    %v1146 = vsel %vm1145, 0, %v1144
    %v1147 = vsub.s32 32, %v1146
    %v1148 = vshll.u32 %v1139, %v1146
    %v1149 = vshrl.u32 %v1131, %v1147
    %v1150 = vor.u32 %v1148, %v1149
    %v1151 = vsub.s32 4294967266, %v1146
    %v1152 = vadd.s32 %v1151, 127
    %v1153 = vshll.u32 %v1152, 23
    %v1154 = vor.u32 4788187, %v1153
    %v1155 = vand.u32 2147483647, %v1154
    %v1157 = vcvt.s32.f32 %v1150
    %v1158 = vmul.f32 %v1157, %v1155
    %v1159 = vxor.u32 %v1158, 2147483648
    %v1160 = vsel %vm1077, %v1159, %v1158
    %v1161 = vsub.s32 4, %v1137
    %v1162 = vsel %vm1077, %v1161, %v1137
    %v1163 = vsel %vm1076, %v23, %v1160
    %v1164 = vsel %vm1076, 0, %v1162
    %v1165 = vcosq.f32.pop %v1163
    %v1166 = vsinq.f32.pop %v1163
    %vm1167 = vweird.f32 %v23
    %v1168 = vand.u32 %v1164, 3
    %vm1169 = vcmp.lt.s32.totalorder %v1168, 2
    %vm1170 = vcmp.eq.s32.totalorder %v1168, 0
    %v1171 = vxor.u32 %v1166, 2147483648
    %v1172 = vsel %vm1170, %v1165, %v1171
    %vm1173 = vcmp.eq.s32.totalorder %v1168, 2
    %v1174 = vxor.u32 %v1165, 2147483648
    %v1175 = vsel %vm1173, %v1174, %v1166
    %v1176 = vsel %vm1169, %v1172, %v1175
    %v1177 = vsel %vm1167, nan, %v1176
    %v1178 = vand.u32 2147483647, %v24
    %vm1179 = vcmp.le.f32.partialorder %v1178, 0.7853982
    %vm1180 = vcmp.lt.s32.totalorder %v24, 0
    %v1181 = vand.u32 %v24, 2139095040
    %v1182 = vshrl.u32 %v1181, 23
    %v1183 = vsub.s32 %v1182, 127
    %v1184 = vand.u32 2147483647, %v24
    %v1185 = vand.u32 %v1184, 8388607
    %v1186 = vor.u32 %v1185, 8388608
    %v1187 = vsub.s32 0, %v1186
    %v1188 = vadd.s32 %v1183, 1
    %vm1189 = vcmp.gt.s32.totalorder %v1188, 0
    %v1190 = vsel %vm1189, %v1188, 0
    %v1191 = vshrl.u32 %v1190, 5
    %v1192 = vand.u32 %v1190, 31
    %v1193 = vsub.s32 32, %v1192
    %v1194 = vshrl.u32 683565275, %v1193
    %v1195 = vshll.u32 683565275, %v1192
    %v1196 = vshrl.u32 2475754826, %v1193
    %v1197 = vor.u32 %v1195, %v1196
    %v1198 = vshll.u32 2475754826, %v1192
    %v1199 = vshrl.u32 2131351028, %v1193
    %v1200 = vor.u32 %v1198, %v1199
    %v1201 = vshll.u32 2131351028, %v1192
    %v1202 = vshrl.u32 2102212464, %v1193
    %v1203 = vor.u32 %v1201, %v1202
    %v1204 = vshll.u32 2102212464, %v1192
    %v1205 = vshrl.u32 920167782, %v1193
    %v1206 = vor.u32 %v1204, %v1205
    %v1207 = vshll.u32 920167782, %v1192
    %v1208 = vshrl.u32 1326507024, %v1193
    %v1209 = vor.u32 %v1207, %v1208
    %vm1210 = vcmp.lt.s32.totalorder %v1191, 1
    %vm1211 = vcmp.lt.s32.totalorder %v1191, 2
    %vm1212 = vcmp.lt.s32.totalorder %v1191, 3
    %vm1213 = vcmp.lt.s32.totalorder %v1191, 4
    %v1214 = vsel %vm1210, %v1194, %v1197
    %v1215 = vsel %vm1213, %v1203, 2102212464
    %v1216 = vsel %vm1212, %v1200, %v1215
    %v1217 = vsel %vm1211, %v1214, %v1216
    %v1218 = vsel %vm1210, %v1197, %v1200
    %v1219 = vsel %vm1213, %v1206, 920167782
    %v1220 = vsel %vm1212, %v1203, %v1219
    %v1221 = vsel %vm1211, %v1218, %v1220
    %v1222 = vsel %vm1210, %v1200, %v1203
    %v1223 = vsel %vm1213, %v1209, 1326507024
    %v1224 = vsel %vm1212, %v1206, %v1223
    %v1225 = vsel %vm1211, %v1222, %v1224
    %v1226 = vshll.u32 %v1186, 8
    %v1227 = vmul.u32.u64.compose %v1226, %v1225
    %v1228 = vextract.low.u32 %v1227
    %v1229 = vextract.high.u32 %v1227
    %v1230 = vmul.u32.u64.compose %v1226, %v1221
    %v1231 = vextract.low.u32 %v1230
    %v1232 = vextract.high.u32 %v1230
    %v1233 = vmul.u32 %v1226, %v1217
    %v1234 = vadd.s32 %v1229, %v1231
    %vm1235 = vc.u32 %v1229, %v1231
    %v1236 = vadd.s32 %v1232, 1
    %v1237 = vsel %vm1235, %v1236, %v1232
    %v1238 = vadd.s32 %v1233, %v1237
    %v1239 = vadd.s32 %v1238, 536870912
    %v1240 = vshrl.u32 %v1239, 30
    %v1241 = vshll.u32 %v1240, 30
    %v1242 = vsub.s32 %v1238, %v1241
    %vm1243 = vcmp.lt.s32.totalorder %v1242, 0
    %v1244 = vsub.s32 0, %v1242
    %v1245 = vsel %vm1243, %v1244, %v1242
    %v1246 = vclz %v1245
    %v1247 = vsub.s32 %v1246, 2
    %vm1248 = vcmp.gt.s32.totalorder 0, %v1247
    %v1249 = vsel %vm1248, 0, %v1247
    %v1250 = vsub.s32 32, %v1249
    %v1251 = vshll.u32 %v1242, %v1249
    %v1252 = vshrl.u32 %v1234, %v1250
    %v1253 = vor.u32 %v1251, %v1252
    %v1254 = vsub.s32 4294967266, %v1249
    %v1255 = vadd.s32 %v1254, 127
    %v1256 = vshll.u32 %v1255, 23
    %v1257 = vor.u32 4788187, %v1256
    %v1258 = vand.u32 2147483647, %v1257
    %v1260 = vcvt.s32.f32 %v1253
    %v1261 = vmul.f32 %v1260, %v1258
    %v1262 = vxor.u32 %v1261, 2147483648
    %v1263 = vsel %vm1180, %v1262, %v1261
    %v1264 = vsub.s32 4, %v1240
    %v1265 = vsel %vm1180, %v1264, %v1240
    %v1266 = vsel %vm1179, %v24, %v1263
    %v1267 = vsel %vm1179, 0, %v1265
    %v1268 = vcosq.f32.pop %v1266
    %v1269 = vsinq.f32.pop %v1266
    %vm1270 = vweird.f32 %v24
    %v1271 = vand.u32 %v1267, 3
    %vm1272 = vcmp.lt.s32.totalorder %v1271, 2
    %vm1273 = vcmp.eq.s32.totalorder %v1271, 0
    %v1274 = vxor.u32 %v1269, 2147483648
    %v1275 = vsel %vm1273, %v1268, %v1274
    %vm1276 = vcmp.eq.s32.totalorder %v1271, 2
    %v1277 = vxor.u32 %v1268, 2147483648
    %v1278 = vsel %vm1276, %v1277, %v1269
    %v1279 = vsel %vm1272, %v1275, %v1278
    %v1280 = vsel %vm1270, nan, %v1279
    %v1281 = vand.u32 2147483647, %v25
    %vm1282 = vcmp.le.f32.partialorder %v1281, 0.7853982
    %vm1283 = vcmp.lt.s32.totalorder %v25, 0
    %v1284 = vand.u32 %v25, 2139095040
    %v1285 = vshrl.u32 %v1284, 23
    %v1286 = vsub.s32 %v1285, 127
    %v1287 = vand.u32 2147483647, %v25
    %v1288 = vand.u32 %v1287, 8388607
    %v1289 = vor.u32 %v1288, 8388608
    %v1290 = vsub.s32 0, %v1289
    %v1291 = vadd.s32 %v1286, 1
    %vm1292 = vcmp.gt.s32.totalorder %v1291, 0
    %v1293 = vsel %vm1292, %v1291, 0
    %v1294 = vshrl.u32 %v1293, 5
    %v1295 = vand.u32 %v1293, 31
    %v1296 = vsub.s32 32, %v1295
    %v1297 = vshrl.u32 683565275, %v1296
    %v1298 = vshll.u32 683565275, %v1295
    %v1299 = vshrl.u32 2475754826, %v1296
    %v1300 = vor.u32 %v1298, %v1299
    %v1301 = vshll.u32 2475754826, %v1295
    %v1302 = vshrl.u32 2131351028, %v1296
    %v1303 = vor.u32 %v1301, %v1302
    %v1304 = vshll.u32 2131351028, %v1295
    %v1305 = vshrl.u32 2102212464, %v1296
    %v1306 = vor.u32 %v1304, %v1305
    %v1307 = vshll.u32 2102212464, %v1295
    %v1308 = vshrl.u32 920167782, %v1296
    %v1309 = vor.u32 %v1307, %v1308
    %v1310 = vshll.u32 920167782, %v1295
    %v1311 = vshrl.u32 1326507024, %v1296
    %v1312 = vor.u32 %v1310, %v1311
    %vm1313 = vcmp.lt.s32.totalorder %v1294, 1
    %vm1314 = vcmp.lt.s32.totalorder %v1294, 2
    %vm1315 = vcmp.lt.s32.totalorder %v1294, 3
    %vm1316 = vcmp.lt.s32.totalorder %v1294, 4
    %v1317 = vsel %vm1313, %v1297, %v1300
    %v1318 = vsel %vm1316, %v1306, 2102212464
    %v1319 = vsel %vm1315, %v1303, %v1318
    %v1320 = vsel %vm1314, %v1317, %v1319
    %v1321 = vsel %vm1313, %v1300, %v1303
    %v1322 = vsel %vm1316, %v1309, 920167782
    %v1323 = vsel %vm1315, %v1306, %v1322
    %v1324 = vsel %vm1314, %v1321, %v1323
    %v1325 = vsel %vm1313, %v1303, %v1306
    %v1326 = vsel %vm1316, %v1312, 1326507024
    %v1327 = vsel %vm1315, %v1309, %v1326
    %v1328 = vsel %vm1314, %v1325, %v1327
    %v1329 = vshll.u32 %v1289, 8
    %v1330 = vmul.u32.u64.compose %v1329, %v1328
    %v1331 = vextract.low.u32 %v1330
    %v1332 = vextract.high.u32 %v1330
    %v1333 = vmul.u32.u64.compose %v1329, %v1324
    %v1334 = vextract.low.u32 %v1333
    %v1335 = vextract.high.u32 %v1333
    %v1336 = vmul.u32 %v1329, %v1320
    %v1337 = vadd.s32 %v1332, %v1334
    %vm1338 = vc.u32 %v1332, %v1334
    %v1339 = vadd.s32 %v1335, 1
    %v1340 = vsel %vm1338, %v1339, %v1335
    %v1341 = vadd.s32 %v1336, %v1340
    %v1342 = vadd.s32 %v1341, 536870912
    %v1343 = vshrl.u32 %v1342, 30
    %v1344 = vshll.u32 %v1343, 30
    %v1345 = vsub.s32 %v1341, %v1344
    %vm1346 = vcmp.lt.s32.totalorder %v1345, 0
    %v1347 = vsub.s32 0, %v1345
    %v1348 = vsel %vm1346, %v1347, %v1345
    %v1349 = vclz %v1348
    %v1350 = vsub.s32 %v1349, 2
    %vm1351 = vcmp.gt.s32.totalorder 0, %v1350
    %v1352 = vsel %vm1351, 0, %v1350
    %v1353 = vsub.s32 32, %v1352
    %v1354 = vshll.u32 %v1345, %v1352
    %v1355 = vshrl.u32 %v1337, %v1353
    %v1356 = vor.u32 %v1354, %v1355
    %v1357 = vsub.s32 4294967266, %v1352
    %v1358 = vadd.s32 %v1357, 127
    %v1359 = vshll.u32 %v1358, 23
    %v1360 = vor.u32 4788187, %v1359
    %v1361 = vand.u32 2147483647, %v1360
    %v1363 = vcvt.s32.f32 %v1356
    %v1364 = vmul.f32 %v1363, %v1361
    %v1365 = vxor.u32 %v1364, 2147483648
    %v1366 = vsel %vm1283, %v1365, %v1364
    %v1367 = vsub.s32 4, %v1343
    %v1368 = vsel %vm1283, %v1367, %v1343
    %v1369 = vsel %vm1282, %v25, %v1366
    %v1370 = vsel %vm1282, 0, %v1368
    %v1371 = vcosq.f32.pop %v1369
    %v1372 = vsinq.f32.pop %v1369
    %vm1373 = vweird.f32 %v25
    %v1374 = vand.u32 %v1370, 3
    %vm1375 = vcmp.lt.s32.totalorder %v1374, 2
    %vm1376 = vcmp.eq.s32.totalorder %v1374, 0
    %v1377 = vxor.u32 %v1372, 2147483648
    %v1378 = vsel %vm1376, %v1371, %v1377
    %vm1379 = vcmp.eq.s32.totalorder %v1374, 2
    %v1380 = vxor.u32 %v1371, 2147483648
    %v1381 = vsel %vm1379, %v1380, %v1372
    %v1382 = vsel %vm1375, %v1378, %v1381
    %v1383 = vsel %vm1373, nan, %v1382
    %v1384 = vand.u32 2147483647, %v26
    %vm1385 = vcmp.le.f32.partialorder %v1384, 0.7853982
    %vm1386 = vcmp.lt.s32.totalorder %v26, 0
    %v1387 = vand.u32 %v26, 2139095040
    %v1388 = vshrl.u32 %v1387, 23
    %v1389 = vsub.s32 %v1388, 127
    %v1390 = vand.u32 2147483647, %v26
    %v1391 = vand.u32 %v1390, 8388607
    %v1392 = vor.u32 %v1391, 8388608
    %v1393 = vsub.s32 0, %v1392
    %v1394 = vadd.s32 %v1389, 1
    %vm1395 = vcmp.gt.s32.totalorder %v1394, 0
    %v1396 = vsel %vm1395, %v1394, 0
    %v1397 = vshrl.u32 %v1396, 5
    %v1398 = vand.u32 %v1396, 31
    %v1399 = vsub.s32 32, %v1398
    %v1400 = vshrl.u32 683565275, %v1399
    %v1401 = vshll.u32 683565275, %v1398
    %v1402 = vshrl.u32 2475754826, %v1399
    %v1403 = vor.u32 %v1401, %v1402
    %v1404 = vshll.u32 2475754826, %v1398
    %v1405 = vshrl.u32 2131351028, %v1399
    %v1406 = vor.u32 %v1404, %v1405
    %v1407 = vshll.u32 2131351028, %v1398
    %v1408 = vshrl.u32 2102212464, %v1399
    %v1409 = vor.u32 %v1407, %v1408
    %v1410 = vshll.u32 2102212464, %v1398
    %v1411 = vshrl.u32 920167782, %v1399
    %v1412 = vor.u32 %v1410, %v1411
    %v1413 = vshll.u32 920167782, %v1398
    %v1414 = vshrl.u32 1326507024, %v1399
    %v1415 = vor.u32 %v1413, %v1414
    %vm1416 = vcmp.lt.s32.totalorder %v1397, 1
    %vm1417 = vcmp.lt.s32.totalorder %v1397, 2
    %vm1418 = vcmp.lt.s32.totalorder %v1397, 3
    %vm1419 = vcmp.lt.s32.totalorder %v1397, 4
    %v1420 = vsel %vm1416, %v1400, %v1403
    %v1421 = vsel %vm1419, %v1409, 2102212464
    %v1422 = vsel %vm1418, %v1406, %v1421
    %v1423 = vsel %vm1417, %v1420, %v1422
    %v1424 = vsel %vm1416, %v1403, %v1406
    %v1425 = vsel %vm1419, %v1412, 920167782
    %v1426 = vsel %vm1418, %v1409, %v1425
    %v1427 = vsel %vm1417, %v1424, %v1426
    %v1428 = vsel %vm1416, %v1406, %v1409
    %v1429 = vsel %vm1419, %v1415, 1326507024
    %v1430 = vsel %vm1418, %v1412, %v1429
    %v1431 = vsel %vm1417, %v1428, %v1430
    %v1432 = vshll.u32 %v1392, 8
    %v1433 = vmul.u32.u64.compose %v1432, %v1431
    %v1434 = vextract.low.u32 %v1433
    %v1435 = vextract.high.u32 %v1433
    %v1436 = vmul.u32.u64.compose %v1432, %v1427
    %v1437 = vextract.low.u32 %v1436
    %v1438 = vextract.high.u32 %v1436
    %v1439 = vmul.u32 %v1432, %v1423
    %v1440 = vadd.s32 %v1435, %v1437
    %vm1441 = vc.u32 %v1435, %v1437
    %v1442 = vadd.s32 %v1438, 1
    %v1443 = vsel %vm1441, %v1442, %v1438
    %v1444 = vadd.s32 %v1439, %v1443
    %v1445 = vadd.s32 %v1444, 536870912
    %v1446 = vshrl.u32 %v1445, 30
    %v1447 = vshll.u32 %v1446, 30
    %v1448 = vsub.s32 %v1444, %v1447
    %vm1449 = vcmp.lt.s32.totalorder %v1448, 0
    %v1450 = vsub.s32 0, %v1448
    %v1451 = vsel %vm1449, %v1450, %v1448
    %v1452 = vclz %v1451
    %v1453 = vsub.s32 %v1452, 2
    %vm1454 = vcmp.gt.s32.totalorder 0, %v1453
    %v1455 = vsel %vm1454, 0, %v1453
    %v1456 = vsub.s32 32, %v1455
    %v1457 = vshll.u32 %v1448, %v1455
    %v1458 = vshrl.u32 %v1440, %v1456
    %v1459 = vor.u32 %v1457, %v1458
    %v1460 = vsub.s32 4294967266, %v1455
    %v1461 = vadd.s32 %v1460, 127
    %v1462 = vshll.u32 %v1461, 23
    %v1463 = vor.u32 4788187, %v1462
    %v1464 = vand.u32 2147483647, %v1463
    %v1466 = vcvt.s32.f32 %v1459
    %v1467 = vmul.f32 %v1466, %v1464
    %v1468 = vxor.u32 %v1467, 2147483648
    %v1469 = vsel %vm1386, %v1468, %v1467
    %v1470 = vsub.s32 4, %v1446
    %v1471 = vsel %vm1386, %v1470, %v1446
    %v1472 = vsel %vm1385, %v26, %v1469
    %v1473 = vsel %vm1385, 0, %v1471
    %v1474 = vcosq.f32.pop %v1472
    %v1475 = vsinq.f32.pop %v1472
    %vm1476 = vweird.f32 %v26
    %v1477 = vand.u32 %v1473, 3
    %vm1478 = vcmp.lt.s32.totalorder %v1477, 2
    %vm1479 = vcmp.eq.s32.totalorder %v1477, 0
    %v1480 = vxor.u32 %v1475, 2147483648
    %v1481 = vsel %vm1479, %v1474, %v1480
    %vm1482 = vcmp.eq.s32.totalorder %v1477, 2
    %v1483 = vxor.u32 %v1474, 2147483648
    %v1484 = vsel %vm1482, %v1483, %v1475
    %v1485 = vsel %vm1478, %v1481, %v1484
    %v1486 = vsel %vm1476, nan, %v1485
    %v1487 = vand.u32 2147483647, %v27
    %vm1488 = vcmp.le.f32.partialorder %v1487, 0.7853982
    %vm1489 = vcmp.lt.s32.totalorder %v27, 0
    %v1490 = vand.u32 %v27, 2139095040
    %v1491 = vshrl.u32 %v1490, 23
    %v1492 = vsub.s32 %v1491, 127
    %v1493 = vand.u32 2147483647, %v27
    %v1494 = vand.u32 %v1493, 8388607
    %v1495 = vor.u32 %v1494, 8388608
    %v1496 = vsub.s32 0, %v1495
    %v1497 = vadd.s32 %v1492, 1
    %vm1498 = vcmp.gt.s32.totalorder %v1497, 0
    %v1499 = vsel %vm1498, %v1497, 0
    %v1500 = vshrl.u32 %v1499, 5
    %v1501 = vand.u32 %v1499, 31
    %v1502 = vsub.s32 32, %v1501
    %v1503 = vshrl.u32 683565275, %v1502
    %v1504 = vshll.u32 683565275, %v1501
    %v1505 = vshrl.u32 2475754826, %v1502
    %v1506 = vor.u32 %v1504, %v1505
    %v1507 = vshll.u32 2475754826, %v1501
    %v1508 = vshrl.u32 2131351028, %v1502
    %v1509 = vor.u32 %v1507, %v1508
    %v1510 = vshll.u32 2131351028, %v1501
    %v1511 = vshrl.u32 2102212464, %v1502
    %v1512 = vor.u32 %v1510, %v1511
    %v1513 = vshll.u32 2102212464, %v1501
    %v1514 = vshrl.u32 920167782, %v1502
    %v1515 = vor.u32 %v1513, %v1514
    %v1516 = vshll.u32 920167782, %v1501
    %v1517 = vshrl.u32 1326507024, %v1502
    %v1518 = vor.u32 %v1516, %v1517
    %vm1519 = vcmp.lt.s32.totalorder %v1500, 1
    %vm1520 = vcmp.lt.s32.totalorder %v1500, 2
    %vm1521 = vcmp.lt.s32.totalorder %v1500, 3
    %vm1522 = vcmp.lt.s32.totalorder %v1500, 4
    %v1523 = vsel %vm1519, %v1503, %v1506
    %v1524 = vsel %vm1522, %v1512, 2102212464
    %v1525 = vsel %vm1521, %v1509, %v1524
    %v1526 = vsel %vm1520, %v1523, %v1525
    %v1527 = vsel %vm1519, %v1506, %v1509
    %v1528 = vsel %vm1522, %v1515, 920167782
    %v1529 = vsel %vm1521, %v1512, %v1528
    %v1530 = vsel %vm1520, %v1527, %v1529
    %v1531 = vsel %vm1519, %v1509, %v1512
    %v1532 = vsel %vm1522, %v1518, 1326507024
    %v1533 = vsel %vm1521, %v1515, %v1532
    %v1534 = vsel %vm1520, %v1531, %v1533
    %v1535 = vshll.u32 %v1495, 8
    %v1536 = vmul.u32.u64.compose %v1535, %v1534
    %v1537 = vextract.low.u32 %v1536
    %v1538 = vextract.high.u32 %v1536
    %v1539 = vmul.u32.u64.compose %v1535, %v1530
    %v1540 = vextract.low.u32 %v1539
    %v1541 = vextract.high.u32 %v1539
    %v1542 = vmul.u32 %v1535, %v1526
    %v1543 = vadd.s32 %v1538, %v1540
    %vm1544 = vc.u32 %v1538, %v1540
    %v1545 = vadd.s32 %v1541, 1
    %v1546 = vsel %vm1544, %v1545, %v1541
    %v1547 = vadd.s32 %v1542, %v1546
    %v1548 = vadd.s32 %v1547, 536870912
    %v1549 = vshrl.u32 %v1548, 30
    %v1550 = vshll.u32 %v1549, 30
    %v1551 = vsub.s32 %v1547, %v1550
    %vm1552 = vcmp.lt.s32.totalorder %v1551, 0
    %v1553 = vsub.s32 0, %v1551
    %v1554 = vsel %vm1552, %v1553, %v1551
    %v1555 = vclz %v1554
    %v1556 = vsub.s32 %v1555, 2
    %vm1557 = vcmp.gt.s32.totalorder 0, %v1556
    %v1558 = vsel %vm1557, 0, %v1556
    %v1559 = vsub.s32 32, %v1558
    %v1560 = vshll.u32 %v1551, %v1558
    %v1561 = vshrl.u32 %v1543, %v1559
    %v1562 = vor.u32 %v1560, %v1561
    %v1563 = vsub.s32 4294967266, %v1558
    %v1564 = vadd.s32 %v1563, 127
    %v1565 = vshll.u32 %v1564, 23
    %v1566 = vor.u32 4788187, %v1565
    %v1567 = vand.u32 2147483647, %v1566
    %v1569 = vcvt.s32.f32 %v1562
    %v1570 = vmul.f32 %v1569, %v1567
    %v1571 = vxor.u32 %v1570, 2147483648
    %v1572 = vsel %vm1489, %v1571, %v1570
    %v1573 = vsub.s32 4, %v1549
    %v1574 = vsel %vm1489, %v1573, %v1549
    %v1575 = vsel %vm1488, %v27, %v1572
    %v1576 = vsel %vm1488, 0, %v1574
    %v1577 = vcosq.f32.pop %v1575
    %v1578 = vsinq.f32.pop %v1575
    %vm1579 = vweird.f32 %v27
    %v1580 = vand.u32 %v1576, 3
    %vm1581 = vcmp.lt.s32.totalorder %v1580, 2
    %vm1582 = vcmp.eq.s32.totalorder %v1580, 0
    %v1583 = vxor.u32 %v1578, 2147483648
    %v1584 = vsel %vm1582, %v1577, %v1583
    %vm1585 = vcmp.eq.s32.totalorder %v1580, 2
    %v1586 = vxor.u32 %v1577, 2147483648
    %v1587 = vsel %vm1585, %v1586, %v1578
    %v1588 = vsel %vm1581, %v1584, %v1587
    %v1589 = vsel %vm1579, nan, %v1588
    %v1590 = vand.u32 2147483647, %v28
    %vm1591 = vcmp.le.f32.partialorder %v1590, 0.7853982
    %vm1592 = vcmp.lt.s32.totalorder %v28, 0
    %v1593 = vand.u32 %v28, 2139095040
    %v1594 = vshrl.u32 %v1593, 23
    %v1595 = vsub.s32 %v1594, 127
    %v1596 = vand.u32 2147483647, %v28
    %v1597 = vand.u32 %v1596, 8388607
    %v1598 = vor.u32 %v1597, 8388608
    %v1599 = vsub.s32 0, %v1598
    %v1600 = vadd.s32 %v1595, 1
    %vm1601 = vcmp.gt.s32.totalorder %v1600, 0
    %v1602 = vsel %vm1601, %v1600, 0
    %v1603 = vshrl.u32 %v1602, 5
    %v1604 = vand.u32 %v1602, 31
    %v1605 = vsub.s32 32, %v1604
    %v1606 = vshrl.u32 683565275, %v1605
    %v1607 = vshll.u32 683565275, %v1604
    %v1608 = vshrl.u32 2475754826, %v1605
    %v1609 = vor.u32 %v1607, %v1608
    %v1610 = vshll.u32 2475754826, %v1604
    %v1611 = vshrl.u32 2131351028, %v1605
    %v1612 = vor.u32 %v1610, %v1611
    %v1613 = vshll.u32 2131351028, %v1604
    %v1614 = vshrl.u32 2102212464, %v1605
    %v1615 = vor.u32 %v1613, %v1614
    %v1616 = vshll.u32 2102212464, %v1604
    %v1617 = vshrl.u32 920167782, %v1605
    %v1618 = vor.u32 %v1616, %v1617
    %v1619 = vshll.u32 920167782, %v1604
    %v1620 = vshrl.u32 1326507024, %v1605
    %v1621 = vor.u32 %v1619, %v1620
    %vm1622 = vcmp.lt.s32.totalorder %v1603, 1
    %vm1623 = vcmp.lt.s32.totalorder %v1603, 2
    %vm1624 = vcmp.lt.s32.totalorder %v1603, 3
    %vm1625 = vcmp.lt.s32.totalorder %v1603, 4
    %v1626 = vsel %vm1622, %v1606, %v1609
    %v1627 = vsel %vm1625, %v1615, 2102212464
    %v1628 = vsel %vm1624, %v1612, %v1627
    %v1629 = vsel %vm1623, %v1626, %v1628
    %v1630 = vsel %vm1622, %v1609, %v1612
    %v1631 = vsel %vm1625, %v1618, 920167782
    %v1632 = vsel %vm1624, %v1615, %v1631
    %v1633 = vsel %vm1623, %v1630, %v1632
    %v1634 = vsel %vm1622, %v1612, %v1615
    %v1635 = vsel %vm1625, %v1621, 1326507024
    %v1636 = vsel %vm1624, %v1618, %v1635
    %v1637 = vsel %vm1623, %v1634, %v1636
    %v1638 = vshll.u32 %v1598, 8
    %v1639 = vmul.u32.u64.compose %v1638, %v1637
    %v1640 = vextract.low.u32 %v1639
    %v1641 = vextract.high.u32 %v1639
    %v1642 = vmul.u32.u64.compose %v1638, %v1633
    %v1643 = vextract.low.u32 %v1642
    %v1644 = vextract.high.u32 %v1642
    %v1645 = vmul.u32 %v1638, %v1629
    %v1646 = vadd.s32 %v1641, %v1643
    %vm1647 = vc.u32 %v1641, %v1643
    %v1648 = vadd.s32 %v1644, 1
    %v1649 = vsel %vm1647, %v1648, %v1644
    %v1650 = vadd.s32 %v1645, %v1649
    %v1651 = vadd.s32 %v1650, 536870912
    %v1652 = vshrl.u32 %v1651, 30
    %v1653 = vshll.u32 %v1652, 30
    %v1654 = vsub.s32 %v1650, %v1653
    %vm1655 = vcmp.lt.s32.totalorder %v1654, 0
    %v1656 = vsub.s32 0, %v1654
    %v1657 = vsel %vm1655, %v1656, %v1654
    %v1658 = vclz %v1657
    %v1659 = vsub.s32 %v1658, 2
    %vm1660 = vcmp.gt.s32.totalorder 0, %v1659
    %v1661 = vsel %vm1660, 0, %v1659
    %v1662 = vsub.s32 32, %v1661
    %v1663 = vshll.u32 %v1654, %v1661
    %v1664 = vshrl.u32 %v1646, %v1662
    %v1665 = vor.u32 %v1663, %v1664
    %v1666 = vsub.s32 4294967266, %v1661
    %v1667 = vadd.s32 %v1666, 127
    %v1668 = vshll.u32 %v1667, 23
    %v1669 = vor.u32 4788187, %v1668
    %v1670 = vand.u32 2147483647, %v1669
    %v1672 = vcvt.s32.f32 %v1665
    %v1673 = vmul.f32 %v1672, %v1670
    %v1674 = vxor.u32 %v1673, 2147483648
    %v1675 = vsel %vm1592, %v1674, %v1673
    %v1676 = vsub.s32 4, %v1652
    %v1677 = vsel %vm1592, %v1676, %v1652
    %v1678 = vsel %vm1591, %v28, %v1675
    %v1679 = vsel %vm1591, 0, %v1677
    %v1680 = vcosq.f32.pop %v1678
    %v1681 = vsinq.f32.pop %v1678
    %vm1682 = vweird.f32 %v28
    %v1683 = vand.u32 %v1679, 3
    %vm1684 = vcmp.lt.s32.totalorder %v1683, 2
    %vm1685 = vcmp.eq.s32.totalorder %v1683, 0
    %v1686 = vxor.u32 %v1681, 2147483648
    %v1687 = vsel %vm1685, %v1680, %v1686
    %vm1688 = vcmp.eq.s32.totalorder %v1683, 2
    %v1689 = vxor.u32 %v1680, 2147483648
    %v1690 = vsel %vm1688, %v1689, %v1681
    %v1691 = vsel %vm1684, %v1687, %v1690
    %v1692 = vsel %vm1682, nan, %v1691
    %s1693 = scalar_lea.vmem [#allocation5], 64
    %1694 = vst [vmem:[%s1693] sm:$0xff] %v140
    %1695 = vst [vmem:[%s1693 + $0x8] sm:$0xff] %v244
    %1696 = vst [vmem:[%s1693 + $0x10] sm:$0xff] %v348
    %1697 = vst [vmem:[%s1693 + $0x18] sm:$0xff] %v452
    %1698 = vst [vmem:[%s1693 + $0x20] sm:$0xff] %v556
    %1699 = vst [vmem:[%s1693 + $0x28] sm:$0xff] %v660
    %1700 = vst [vmem:[%s1693 + $0x30] sm:$0xff] %v764
    %1701 = vst [vmem:[%s1693 + $0x38] sm:$0xff] %v868
    %s1702 = scalar_lea.vmem [#allocation5], 128
    %1703 = vst [vmem:[%s1702] sm:$0xff] %v971
    %1704 = vst [vmem:[%s1702 + $0x8] sm:$0xff] %v1074
    %1705 = vst [vmem:[%s1702 + $0x10] sm:$0xff] %v1177
    %1706 = vst [vmem:[%s1702 + $0x18] sm:$0xff] %v1280
    %1707 = vst [vmem:[%s1702 + $0x20] sm:$0xff] %v1383
    %1708 = vst [vmem:[%s1702 + $0x28] sm:$0xff] %v1486
    %1709 = vst [vmem:[%s1702 + $0x30] sm:$0xff] %v1589
    %1710 = vst [vmem:[%s1702 + $0x38] sm:$0xff] %v1692
    %v1711 = vmul.f32 %v140, 2.0
    %v1712 = vmul.f32 %v244, 2.0
    %v1713 = vmul.f32 %v348, 2.0
    %v1714 = vmul.f32 %v452, 2.0
    %v1715 = vmul.f32 %v556, 2.0
    %v1716 = vmul.f32 %v660, 2.0
    %v1717 = vmul.f32 %v764, 2.0
    %v1718 = vmul.f32 %v868, 2.0
    %v1719 = vmul.f32 %v1711, %v971
    %v1720 = vmul.f32 %v1712, %v1074
    %v1721 = vmul.f32 %v1713, %v1177
    %v1722 = vmul.f32 %v1714, %v1280
    %v1723 = vmul.f32 %v1715, %v1383
    %v1724 = vmul.f32 %v1716, %v1486
    %v1725 = vmul.f32 %v1717, %v1589
    %v1726 = vmul.f32 %v1718, %v1692
    %v1727 = vmul.f32 %v971, %v971
    %v1728 = vmul.f32 %v1074, %v1074
    %v1729 = vmul.f32 %v1177, %v1177
    %v1730 = vmul.f32 %v1280, %v1280
    %v1731 = vmul.f32 %v1383, %v1383
    %v1732 = vmul.f32 %v1486, %v1486
    %v1733 = vmul.f32 %v1589, %v1589
    %v1734 = vmul.f32 %v1692, %v1692
    %v1735 = vmul.f32 %v140, %v140
    %v1736 = vmul.f32 %v244, %v244
    %v1737 = vmul.f32 %v348, %v348
    %v1738 = vmul.f32 %v452, %v452
    %v1739 = vmul.f32 %v556, %v556
    %v1740 = vmul.f32 %v660, %v660
    %v1741 = vmul.f32 %v764, %v764
    %v1742 = vmul.f32 %v868, %v868
    %v1743 = vsub.f32 %v1727, %v1735
    %v1744 = vsub.f32 %v1728, %v1736
    %v1745 = vsub.f32 %v1729, %v1737
    %v1746 = vsub.f32 %v1730, %v1738
    %v1747 = vsub.f32 %v1731, %v1739
    %v1748 = vsub.f32 %v1732, %v1740
    %v1749 = vsub.f32 %v1733, %v1741
    %v1750 = vsub.f32 %v1734, %v1742
    %s1751 = scalar_lea.vmem [#allocation5], 192
    %1752 = vst [vmem:[%s1751] sm:$0xff] %v1719
    %1753 = vst [vmem:[%s1751 + $0x8] sm:$0xff] %v1720
    %1754 = vst [vmem:[%s1751 + $0x10] sm:$0xff] %v1721
    %1755 = vst [vmem:[%s1751 + $0x18] sm:$0xff] %v1722
    %1756 = vst [vmem:[%s1751 + $0x20] sm:$0xff] %v1723
    %1757 = vst [vmem:[%s1751 + $0x28] sm:$0xff] %v1724
    %1758 = vst [vmem:[%s1751 + $0x30] sm:$0xff] %v1725
    %1759 = vst [vmem:[%s1751 + $0x38] sm:$0xff] %v1726
    %s1760 = scalar_lea.vmem [#allocation5], 256
    %1761 = vst [vmem:[%s1760] sm:$0xff] %v1743
    %1762 = vst [vmem:[%s1760 + $0x8] sm:$0xff] %v1744
    %1763 = vst [vmem:[%s1760 + $0x10] sm:$0xff] %v1745
    %1764 = vst [vmem:[%s1760 + $0x18] sm:$0xff] %v1746
    %1765 = vst [vmem:[%s1760 + $0x20] sm:$0xff] %v1747
    %1766 = vst [vmem:[%s1760 + $0x28] sm:$0xff] %v1748
    %1767 = vst [vmem:[%s1760 + $0x30] sm:$0xff] %v1749
    %1768 = vst [vmem:[%s1760 + $0x38] sm:$0xff] %v1750
    %v1769 = vmul.f32 %v1719, 2.0
    %v1770 = vmul.f32 %v1720, 2.0
    %v1771 = vmul.f32 %v1721, 2.0
    %v1772 = vmul.f32 %v1722, 2.0
    %v1773 = vmul.f32 %v1723, 2.0
    %v1774 = vmul.f32 %v1724, 2.0
    %v1775 = vmul.f32 %v1725, 2.0
    %v1776 = vmul.f32 %v1726, 2.0
    %v1777 = vmul.f32 %v1769, %v1743
    %v1778 = vmul.f32 %v1770, %v1744
    %v1779 = vmul.f32 %v1771, %v1745
    %v1780 = vmul.f32 %v1772, %v1746
    %v1781 = vmul.f32 %v1773, %v1747
    %v1782 = vmul.f32 %v1774, %v1748
    %v1783 = vmul.f32 %v1775, %v1749
    %v1784 = vmul.f32 %v1776, %v1750
    %v1785 = vmul.f32 %v1743, %v1743
    %v1786 = vmul.f32 %v1744, %v1744
    %v1787 = vmul.f32 %v1745, %v1745
    %v1788 = vmul.f32 %v1746, %v1746
    %v1789 = vmul.f32 %v1747, %v1747
    %v1790 = vmul.f32 %v1748, %v1748
    %v1791 = vmul.f32 %v1749, %v1749
    %v1792 = vmul.f32 %v1750, %v1750
    %v1793 = vmul.f32 %v1719, %v1719
    %v1794 = vmul.f32 %v1720, %v1720
    %v1795 = vmul.f32 %v1721, %v1721
    %v1796 = vmul.f32 %v1722, %v1722
    %v1797 = vmul.f32 %v1723, %v1723
    %v1798 = vmul.f32 %v1724, %v1724
    %v1799 = vmul.f32 %v1725, %v1725
    %v1800 = vmul.f32 %v1726, %v1726
    %v1801 = vsub.f32 %v1785, %v1793
    %v1802 = vsub.f32 %v1786, %v1794
    %v1803 = vsub.f32 %v1787, %v1795
    %v1804 = vsub.f32 %v1788, %v1796
    %v1805 = vsub.f32 %v1789, %v1797
    %v1806 = vsub.f32 %v1790, %v1798
    %v1807 = vsub.f32 %v1791, %v1799
    %v1808 = vsub.f32 %v1792, %v1800
    %s1809 = scalar_lea.vmem [#allocation5], 320
    %1810 = vst [vmem:[%s1809] sm:$0xff] %v1777
    %1811 = vst [vmem:[%s1809 + $0x8] sm:$0xff] %v1778
    %1812 = vst [vmem:[%s1809 + $0x10] sm:$0xff] %v1779
    %1813 = vst [vmem:[%s1809 + $0x18] sm:$0xff] %v1780
    %1814 = vst [vmem:[%s1809 + $0x20] sm:$0xff] %v1781
    %1815 = vst [vmem:[%s1809 + $0x28] sm:$0xff] %v1782
    %1816 = vst [vmem:[%s1809 + $0x30] sm:$0xff] %v1783
    %1817 = vst [vmem:[%s1809 + $0x38] sm:$0xff] %v1784
    %s1818 = scalar_lea.vmem [#allocation5], 384
    %1819 = vst [vmem:[%s1818] sm:$0xff] %v1801
    %1820 = vst [vmem:[%s1818 + $0x8] sm:$0xff] %v1802
    %1821 = vst [vmem:[%s1818 + $0x10] sm:$0xff] %v1803
    %1822 = vst [vmem:[%s1818 + $0x18] sm:$0xff] %v1804
    %1823 = vst [vmem:[%s1818 + $0x20] sm:$0xff] %v1805
    %1824 = vst [vmem:[%s1818 + $0x28] sm:$0xff] %v1806
    %1825 = vst [vmem:[%s1818 + $0x30] sm:$0xff] %v1807
    %1826 = vst [vmem:[%s1818 + $0x38] sm:$0xff] %v1808
    %v1827 = vmul.f32 %v1777, 2.0
    %v1828 = vmul.f32 %v1778, 2.0
    %v1829 = vmul.f32 %v1779, 2.0
    %v1830 = vmul.f32 %v1780, 2.0
    %v1831 = vmul.f32 %v1781, 2.0
    %v1832 = vmul.f32 %v1782, 2.0
    %v1833 = vmul.f32 %v1783, 2.0
    %v1834 = vmul.f32 %v1784, 2.0
    %v1835 = vmul.f32 %v1827, %v1801
    %v1836 = vmul.f32 %v1828, %v1802
    %v1837 = vmul.f32 %v1829, %v1803
    %v1838 = vmul.f32 %v1830, %v1804
    %v1839 = vmul.f32 %v1831, %v1805
    %v1840 = vmul.f32 %v1832, %v1806
    %v1841 = vmul.f32 %v1833, %v1807
    %v1842 = vmul.f32 %v1834, %v1808
    %v1843 = vmul.f32 %v1801, %v1801
    %v1844 = vmul.f32 %v1802, %v1802
    %v1845 = vmul.f32 %v1803, %v1803
    %v1846 = vmul.f32 %v1804, %v1804
    %v1847 = vmul.f32 %v1805, %v1805
    %v1848 = vmul.f32 %v1806, %v1806
    %v1849 = vmul.f32 %v1807, %v1807
    %v1850 = vmul.f32 %v1808, %v1808
    %v1851 = vmul.f32 %v1777, %v1777
    %v1852 = vmul.f32 %v1778, %v1778
    %v1853 = vmul.f32 %v1779, %v1779
    %v1854 = vmul.f32 %v1780, %v1780
    %v1855 = vmul.f32 %v1781, %v1781
    %v1856 = vmul.f32 %v1782, %v1782
    %v1857 = vmul.f32 %v1783, %v1783
    %v1858 = vmul.f32 %v1784, %v1784
    %v1859 = vsub.f32 %v1843, %v1851
    %v1860 = vsub.f32 %v1844, %v1852
    %v1861 = vsub.f32 %v1845, %v1853
    %v1862 = vsub.f32 %v1846, %v1854
    %v1863 = vsub.f32 %v1847, %v1855
    %v1864 = vsub.f32 %v1848, %v1856
    %v1865 = vsub.f32 %v1849, %v1857
    %v1866 = vsub.f32 %v1850, %v1858
    %s1867 = scalar_lea.vmem [#allocation5], 448
    %1868 = vst [vmem:[%s1867] sm:$0xff] %v1835
    %1869 = vst [vmem:[%s1867 + $0x8] sm:$0xff] %v1836
    %1870 = vst [vmem:[%s1867 + $0x10] sm:$0xff] %v1837
    %1871 = vst [vmem:[%s1867 + $0x18] sm:$0xff] %v1838
    %1872 = vst [vmem:[%s1867 + $0x20] sm:$0xff] %v1839
    %1873 = vst [vmem:[%s1867 + $0x28] sm:$0xff] %v1840
    %1874 = vst [vmem:[%s1867 + $0x30] sm:$0xff] %v1841
    %1875 = vst [vmem:[%s1867 + $0x38] sm:$0xff] %v1842
    %s1876 = scalar_lea.vmem [#allocation5], 512
    %1877 = vst [vmem:[%s1876] sm:$0xff] %v1859
    %1878 = vst [vmem:[%s1876 + $0x8] sm:$0xff] %v1860
    %1879 = vst [vmem:[%s1876 + $0x10] sm:$0xff] %v1861
    %1880 = vst [vmem:[%s1876 + $0x18] sm:$0xff] %v1862
    %1881 = vst [vmem:[%s1876 + $0x20] sm:$0xff] %v1863
    %1882 = vst [vmem:[%s1876 + $0x28] sm:$0xff] %v1864
    %1883 = vst [vmem:[%s1876 + $0x30] sm:$0xff] %v1865
    %1884 = vst [vmem:[%s1876 + $0x38] sm:$0xff] %v1866
    // Predicated region
    $region10: #{tpu_custom_call.1} parent=1 // pred_check
      _
    $region11: #{tpu_custom_call.1} parent=1 // pred_check_branch
      %1886 = sbr.rel (0) target = $region13
    $region12: #{tpu_custom_call.1} parent=1 // pred_region
      %s1888 = ssub.s32 9216, 9216
      %1889 = vsyncadd [#allocation4], %s1888
      %s1890 = sshll.u32 [#allocation5], 4
      %s1891 = int_to_ptr.vmem [resolvable:$true] %s1890
      %1896 = dma.vmem_to_hbm [thread:$0]  %s1891, 9216, %s1, [#allocation4], 1024, 1024, 64
    $region13: #{tpu_custom_call.1} parent=1 // pred_fallthru
      _
    // Predicated region
    $region14: #{tpu_custom_call.1} parent=1 // pred_check
      _
    $region15: #{tpu_custom_call.1} parent=1 // pred_check_branch
      %1898 = sbr.rel (0) target = $region17
    $region16: #{tpu_custom_call.1} parent=1 // pred_region
      %1899 = dma.done [#allocation4], 9216
    $region17: #{tpu_custom_call.1} parent=1 // pred_fallthru
      _
    %1900 = vsyncpa [#allocation3], 1
    %1901 = vsyncpa [#allocation4], 1

</llo_original>
